<compile_context>
chip_gen: v7x
topology: tpu7x:2x2x1
jax: 0.10.0
libtpu: 0.0.40
codegen_flags: <defaults>
</compile_context>

<pallas_src>
import math

import jax
import jax.numpy as jnp
from jax import lax
from jax.experimental import pallas as pl
from jax.experimental.pallas import tpu as pltpu

_LANE = 128


def _round_up(x, m):
    return ((x + m - 1) // m) * m


def _head_kernel(x_ref, w1_ref, b1_ref, w2_ref, b2_ref, o_ref):
    """Fused Linear -> Swish -> Linear for one batch tile.

    x_ref : (tm, K)  f32        w1_ref: (K, H)  bf16   b1_ref: (1, H)  f32
    w2_ref: (H, Np)  bf16       b2_ref: (1, Np) f32    o_ref : (tm, Np) f32
    """
    x = x_ref[...].astype(jnp.bfloat16)              # cast right before the dot

    # Linear1: (tm, K) @ (K, H) -> (tm, H), f32 accumulation on the MXU.
    h = lax.dot_general(
        x, w1_ref[...],
        dimension_numbers=(((1,), (0,)), ((), ())),
        preferred_element_type=jnp.float32,
    ) + b1_ref[...]

    # Swish in f32: x * sigmoid(x); sigmoid routes to the EUP slot.
    h = h * jax.nn.sigmoid(h)

    # Linear2: (tm, H) @ (H, Np) -> (tm, Np), Np lane-dense (padded to 128).
    out = lax.dot_general(
        h.astype(jnp.bfloat16), w2_ref[...],
        dimension_numbers=(((1,), (0,)), ((), ())),
        preferred_element_type=jnp.float32,
    ) + b2_ref[...]

    o_ref[...] = out.astype(o_ref.dtype)


def prepare_head_params(w1, b1, w2, b2, *, weight_dtype=jnp.bfloat16):
    """One-time weight prep (model-load time): transpose, pad classes to 128
    lanes, cast matmul operands to bf16.  PyTorch nn.Linear layout in:
    w1 (H, K), b1 (H,), w2 (N, H), b2 (N,)."""
    H, K = w1.shape
    N, H2 = w2.shape
    assert H == H2 and b1.shape == (H,) and b2.shape == (N,)
    Np = max(_LANE, _round_up(N, _LANE))

    w1t = jnp.asarray(w1, jnp.float32).T.astype(weight_dtype)              # (K, H)
    w2t = jnp.pad(jnp.asarray(w2, jnp.float32), ((0, Np - N), (0, 0))).T \
             .astype(weight_dtype)                                         # (H, Np)
    b1r = jnp.asarray(b1, jnp.float32).reshape(1, H)                       # (1, H)
    b2r = jnp.pad(jnp.asarray(b2, jnp.float32), (0, Np - N)).reshape(1, Np)
    return (w1t, b1r, w2t, b2r)


def supce_head_forward(features, params, num_classes, *, tm=256):
    """features: (M, K) f32; params from prepare_head_params."""
    w1t, b1r, w2t, b2r = params
    M, K = features.shape
    K2, H = w1t.shape
    H2, Np = w2t.shape
    assert K == K2 and H == H2 and b1r.shape == (1, H) and b2r.shape == (1, Np)

    # cdiv-based batch tiling: tile is a multiple of 8, batch padded up to a
    # multiple of the tile, so large M pipelines and megacore-splits cleanly.
    tm_eff = min(tm, _round_up(M, 8))
    Mp = _round_up(M, tm_eff)
    x = features if Mp == M else jnp.pad(features, ((0, Mp - M), (0, 0)))
    grid = (Mp // tm_eff,)

    out = pl.pallas_call(
        _head_kernel,
        out_shape=jax.ShapeDtypeStruct((Mp, Np), jnp.float32),
        grid_spec=pltpu.PrefetchScalarGridSpec(
            num_scalar_prefetch=0,
            grid=grid,
            in_specs=[
                pl.BlockSpec((tm_eff, K), lambda i: (i, 0)),   # x tile (pipelined)
                pl.BlockSpec((K, H), lambda i: (0, 0)),        # W1^T bf16 (resident)
                pl.BlockSpec((1, H), lambda i: (0, 0)),        # b1
                pl.BlockSpec((H, Np), lambda i: (0, 0)),       # W2^T bf16 (resident)
                pl.BlockSpec((1, Np), lambda i: (0, 0)),       # b2 padded
            ],
            out_specs=pl.BlockSpec((tm_eff, Np), lambda i: (i, 0)),
        ),
        compiler_params=pltpu.CompilerParams(
            dimension_semantics=("parallel",),
            vmem_limit_bytes=32 << 20,   # explicit: safe on v5e/v6e/v7x budgets
        ),
    )(x, w1t, b1r, w2t, b2r)

    return out[:M, :num_classes]


if __name__ == "__main__":
    # EfficientNet-b0: encoder._fc.in_features = 1280; head hidden = 640; classes = 2.
    feat_dim = 1280
    hidden = feat_dim // 2
    num_classes = 2
    batch = 8

    key = jax.random.PRNGKey(0)
    k_x, k_w1, k_b1, k_w2, k_b2 = jax.random.split(key, 5)

    # nn.Linear-style init (uniform +/- 1/sqrt(fan_in)).
    bound1 = 1.0 / math.sqrt(feat_dim)
    w1 = jax.random.uniform(k_w1, (hidden, feat_dim), jnp.float32, -bound1, bound1)
    b1 = jax.random.uniform(k_b1, (hidden,), jnp.float32, -bound1, bound1)
    bound2 = 1.0 / math.sqrt(hidden)
    w2 = jax.random.uniform(k_w2, (num_classes, hidden), jnp.float32, -bound2, bound2)
    b2 = jax.random.uniform(k_b2, (num_classes,), jnp.float32, -bound2, bound2)

    features = jax.random.normal(k_x, (batch, feat_dim), jnp.float32)

    # One-time weight prep (hoisted out of the forward path).
    params = prepare_head_params(w1, b1, w2, b2)

    out = supce_head_forward(features, params, num_classes)
    out = jax.block_until_ready(out)
    assert out.shape == (batch, num_classes)

    # Precision-matched reference: bf16 matmul operands, f32 accumulate,
    # f32 bias + Swish (same numerics as the kernel, dropout = identity).
    h_ref = jnp.dot(features.astype(jnp.bfloat16), w1.T.astype(jnp.bfloat16),
                    preferred_element_type=jnp.float32) + b1
    h_ref = h_ref * jax.nn.sigmoid(h_ref)
    ref = jnp.dot(h_ref.astype(jnp.bfloat16), w2.T.astype(jnp.bfloat16),
                  preferred_element_type=jnp.float32) + b2
    assert jnp.allclose(out, ref, atol=1e-3, rtol=1e-3), "mismatch vs bf16 reference"

    # Loose sanity check vs the full-f32 PyTorch-equivalent forward.
    h32 = features @ w1.T + b1
    h32 = h32 * jax.nn.sigmoid(h32)
    ref32 = h32 @ w2.T + b2
    assert jnp.allclose(out, ref32, atol=5e-2, rtol=5e-2), "mismatch vs f32 reference"

    print("KERNEL_OK")
</pallas_src>

<mosaic_0001>
module attributes {stable_mosaic.version = 11 : i64} {
  func.func @_head_kernel(%arg0: i32, %arg1: memref<8x1280xf32, #tpu.memory_space<vmem>>, %arg2: memref<1280x640xbf16, #tpu.memory_space<vmem>>, %arg3: memref<1x640xf32, #tpu.memory_space<vmem>>, %arg4: memref<640x128xbf16, #tpu.memory_space<vmem>>, %arg5: memref<1x128xf32, #tpu.memory_space<vmem>>, %arg6: memref<8x128xf32, #tpu.memory_space<vmem>>) attributes {dimension_semantics = [#tpu.dimension_semantics<parallel>], iteration_bounds = array<i64: 1>, scalar_prefetch = 0 : i64, scratch_operands = 0 : i64, tpu.core_type = #tpu.core_type<tc>, window_params = [{transform_indices = @transform_0, window_bounds = array<i64: 8, 1280>}, {pipeline_mode = #tpu.pipeline_mode<synchronous>, transform_indices = @transform_1, window_bounds = array<i64: 1280, 640>}, {pipeline_mode = #tpu.pipeline_mode<synchronous>, transform_indices = @transform_2, window_bounds = array<i64: 1, 640>}, {pipeline_mode = #tpu.pipeline_mode<synchronous>, transform_indices = @transform_3, window_bounds = array<i64: 640, 128>}, {pipeline_mode = #tpu.pipeline_mode<synchronous>, transform_indices = @transform_4, window_bounds = array<i64: 1, 128>}, {transform_indices = @transform_5, window_bounds = array<i64: 8, 128>}]} {
    %c0 = arith.constant 0 : index
    %c0_0 = arith.constant 0 : index
    %0 = vector.load %arg1[%c0, %c0_0] : memref<8x1280xf32, #tpu.memory_space<vmem>>, vector<8x1280xf32>
    %1 = arith.truncf %0 : vector<8x1280xf32> to vector<8x1280xbf16>
    %c0_1 = arith.constant 0 : index
    %c0_2 = arith.constant 0 : index
    %2 = vector.load %arg2[%c0_1, %c0_2] : memref<1280x640xbf16, #tpu.memory_space<vmem>>, vector<1280x640xbf16>
    %cst = arith.constant dense<0.000000e+00> : vector<8x640xf32>
    %3 = tpu.matmul %1, %2, %cst {dimension_numbers = #tpu.dot_dimension_numbers<[1], [0], [0], [1], [0, 0, 1, 1], [], []>} : vector<8x1280xbf16>, vector<1280x640xbf16>, vector<8x640xf32> -> vector<8x640xf32>
    %c0_3 = arith.constant 0 : index
    %c0_4 = arith.constant 0 : index
    %4 = vector.load %arg3[%c0_3, %c0_4] : memref<1x640xf32, #tpu.memory_space<vmem>>, vector<1x640xf32>
    %5 = vector.broadcast %4 : vector<1x640xf32> to vector<8x640xf32>
    %6 = arith.addf %3, %5 : vector<8x640xf32>
    %7 = arith.negf %6 : vector<8x640xf32>
    %8 = math.exp %7 : vector<8x640xf32>
    %cst_5 = arith.constant 1.000000e+00 : f32
    %9 = vector.broadcast %cst_5 : f32 to vector<8x640xf32>
    %10 = arith.addf %9, %8 : vector<8x640xf32>
    %11 = arith.divf %9, %10 : vector<8x640xf32>
    %12 = arith.mulf %6, %11 : vector<8x640xf32>
    %13 = arith.truncf %12 : vector<8x640xf32> to vector<8x640xbf16>
    %c0_6 = arith.constant 0 : index
    %c0_7 = arith.constant 0 : index
    %14 = vector.load %arg4[%c0_6, %c0_7] : memref<640x128xbf16, #tpu.memory_space<vmem>>, vector<640x128xbf16>
    %cst_8 = arith.constant dense<0.000000e+00> : vector<8x128xf32>
    %15 = tpu.matmul %13, %14, %cst_8 {dimension_numbers = #tpu.dot_dimension_numbers<[1], [0], [0], [1], [0, 0, 1, 1], [], []>} : vector<8x640xbf16>, vector<640x128xbf16>, vector<8x128xf32> -> vector<8x128xf32>
    %c0_9 = arith.constant 0 : index
    %c0_10 = arith.constant 0 : index
    %16 = vector.load %arg5[%c0_9, %c0_10] : memref<1x128xf32, #tpu.memory_space<vmem>>, vector<1x128xf32>
    %17 = vector.broadcast %16 : vector<1x128xf32> to vector<8x128xf32>
    %18 = arith.addf %15, %17 : vector<8x128xf32>
    %c0_11 = arith.constant 0 : index
    %c0_12 = arith.constant 0 : index
    %19 = vector.load %arg6[%c0_11, %c0_12] : memref<8x128xf32, #tpu.memory_space<vmem>>, vector<8x128xf32>
    tpu.vector_store %arg6[%c0_11, %c0_12], %18 {strides = array<i32>} : memref<8x128xf32, #tpu.memory_space<vmem>>, vector<8x128xf32>,
    return
  }
  func.func @transform_0(%arg0: i32) -> (i32, i32) {
    %c0_i32 = arith.constant 0 : i32
    %c0_i32_0 = arith.constant 0 : i32
    return %arg0, %c0_i32 : i32, i32
  }
  func.func @transform_1(%arg0: i32) -> (i32, i32) {
    %c0_i32 = arith.constant 0 : i32
    %c0_i32_0 = arith.constant 0 : i32
    %c0_i32_1 = arith.constant 0 : i32
    return %c0_i32, %c0_i32_0 : i32, i32
  }
  func.func @transform_2(%arg0: i32) -> (i32, i32) {
    %c0_i32 = arith.constant 0 : i32
    %c0_i32_0 = arith.constant 0 : i32
    %c0_i32_1 = arith.constant 0 : i32
    return %c0_i32, %c0_i32_0 : i32, i32
  }
  func.func @transform_3(%arg0: i32) -> (i32, i32) {
    %c0_i32 = arith.constant 0 : i32
    %c0_i32_0 = arith.constant 0 : i32
    %c0_i32_1 = arith.constant 0 : i32
    return %c0_i32, %c0_i32_0 : i32, i32
  }
  func.func @transform_4(%arg0: i32) -> (i32, i32) {
    %c0_i32 = arith.constant 0 : i32
    %c0_i32_0 = arith.constant 0 : i32
    %c0_i32_1 = arith.constant 0 : i32
    return %c0_i32, %c0_i32_0 : i32, i32
  }
  func.func @transform_5(%arg0: i32) -> (i32, i32) {
    %c0_i32 = arith.constant 0 : i32
    %c0_i32_0 = arith.constant 0 : i32
    return %arg0, %c0_i32 : i32, i32
  }
}

</mosaic_0001>

<llo_original>
// kernel: tpu_custom_call.1
$region0: #{tpu_custom_call.1}
  #allocation0 [shape = 'u32[]', space=smem, size = 0x4, offset = 0x4, fixed_abs, tag = 'smem constant byte address 0x4 - core index']
  #allocation1 [shape = 'u32[144,128]{1,0:T(1,128)}', space=vmem, size = 0x12000, scoped, tag = 'internal scratch']
  %s0 = inlined_call_operand.hbm [shape: f32[8,1280], index: 0, kind: input, shape index: {}]
  %s1 = inlined_call_operand.hbm [shape: bf16[1280,640], index: 1, kind: input, shape index: {}]
  %s2 = inlined_call_operand.hbm [shape: f32[1,640], index: 2, kind: input, shape index: {}]
  %s3 = inlined_call_operand.hbm [shape: bf16[640,128], index: 3, kind: input, shape index: {}]
  %s4 = inlined_call_operand.hbm [shape: f32[1,128], index: 4, kind: input, shape index: {}]
  %s5 = inlined_call_operand.hbm [shape: f32[8,128], index: 5, kind: output, shape index: {}]
  %s6 = sld [smem:[#allocation0]]
  $region50: #{tpu_custom_call.1} parent=0
    _
  %s8 = ssub.s32 1, %s6
  %s9 = scalar_select 0, %s8, %s6
  $region1: #{tpu_custom_call.1} parent=0
    #allocation2 [shape = 'u8[40960]{0}', space=vmem, size = 0xa000, scoped, tag = 'input window, operand 0, single buffered']
    #allocation3 [shape = 's32[1]{0}', space=sflag, size = 0x4, scoped, tag = 'scoped memory for tpu_custom_call.1']
    #allocation4 [shape = 's32[1]{0}', space=sflag, size = 0x4, scoped, tag = 'scoped memory for tpu_custom_call.1']
    #allocation5 [shape = 'u8[1638400]{0}', space=vmem, size = 0x190000, scoped, tag = 'input window, operand 1, single buffered']
    #allocation6 [shape = 's32[1]{0}', space=sflag, size = 0x4, scoped, tag = 'scoped memory for tpu_custom_call.1']
    #allocation7 [shape = 'u8[2560]{0}', space=vmem, size = 0xc00, scoped, tag = 'input window, operand 2, single buffered']
    #allocation8 [shape = 'u8[163840]{0}', space=vmem, size = 0x28000, scoped, tag = 'input window, operand 3, single buffered']
    #allocation9 [shape = 's32[1]{0}', space=sflag, size = 0x4, scoped, tag = 'scoped memory for tpu_custom_call.1']
    #allocation10 [shape = 'u8[512]{0}', space=vmem, size = 0x400, scoped, tag = 'input window, operand 4, single buffered']
    #allocation11 [shape = 'u8[4096]{0}', space=vmem, size = 0x1000, scoped, tag = 'output window, operand 0, single buffered']
    %10 = vsyncpa [#allocation3], 0
    %11 = vsyncpa [#allocation6], 0
    %12 = vsyncpa [#allocation9], 0
    %13 = vsyncpa [#allocation4], 0
    // Predicated region
    $region2: #{tpu_custom_call.1} parent=1 // pred_check
      _
    $region3: #{tpu_custom_call.1} parent=1 // pred_check_branch
      %15 = sbr.rel (0) target = $region5
    $region4: #{tpu_custom_call.1} parent=1 // pred_region
      %s17 = ssub.s32 1280, 1280
      %18 = vsyncadd [#allocation3], %s17
      %s20 = sshll.u32 [#allocation2], 4
      %s21 = int_to_ptr.vmem [resolvable:$true] %s20
      %23 = dma.hbm_to_vmem [thread:$0]  %s0, 1280, %s21, [#allocation3]
    $region5: #{tpu_custom_call.1} parent=1 // pred_fallthru
      _
    // Predicated region
    $region6: #{tpu_custom_call.1} parent=1 // pred_check
      _
    $region7: #{tpu_custom_call.1} parent=1 // pred_check_branch
      %25 = sbr.rel (0) target = $region9
    $region8: #{tpu_custom_call.1} parent=1 // pred_region
      %s27 = ssub.s32 51200, 51200
      %28 = vsyncadd [#allocation6], %s27
      %s29 = sshll.u32 [#allocation5], 4
      %s30 = int_to_ptr.vmem [resolvable:$true] %s29
      %35 = dma.hbm_to_vmem [thread:$0]  %s1, 51200, %s30, [#allocation6], 320, 320, 20
    $region9: #{tpu_custom_call.1} parent=1 // pred_fallthru
      _
    // Predicated region
    $region10: #{tpu_custom_call.1} parent=1 // pred_check
      _
    $region11: #{tpu_custom_call.1} parent=1 // pred_check_branch
      %37 = sbr.rel (0) target = $region13
    $region12: #{tpu_custom_call.1} parent=1 // pred_region
      %s39 = ssub.s32 80, 80
      %40 = vsyncadd [#allocation6], %s39
      %s42 = sshll.u32 [#allocation7], 4
      %s43 = int_to_ptr.vmem [resolvable:$true] %s42
      %45 = dma.hbm_to_vmem [thread:$0]  %s2, 80, %s43, [#allocation6]
    $region13: #{tpu_custom_call.1} parent=1 // pred_fallthru
      _
    // Predicated region
    $region14: #{tpu_custom_call.1} parent=1 // pred_check
      _
    $region15: #{tpu_custom_call.1} parent=1 // pred_check_branch
      %47 = sbr.rel (0) target = $region17
    $region16: #{tpu_custom_call.1} parent=1 // pred_region
      %s49 = ssub.s32 5120, 5120
      %50 = vsyncadd [#allocation9], %s49
      %s51 = sshll.u32 [#allocation8], 4
      %s52 = int_to_ptr.vmem [resolvable:$true] %s51
      %57 = dma.hbm_to_vmem [thread:$0]  %s3, 5120, %s52, [#allocation9], 64, 64, 4
    $region17: #{tpu_custom_call.1} parent=1 // pred_fallthru
      _
    // Predicated region
    $region18: #{tpu_custom_call.1} parent=1 // pred_check
      _
    $region19: #{tpu_custom_call.1} parent=1 // pred_check_branch
      %59 = sbr.rel (0) target = $region21
    $region20: #{tpu_custom_call.1} parent=1 // pred_region
      %s61 = ssub.s32 16, 16
      %62 = vsyncadd [#allocation9], %s61
      %s64 = sshll.u32 [#allocation10], 4
      %s65 = int_to_ptr.vmem [resolvable:$true] %s64
      %67 = dma.hbm_to_vmem [thread:$0]  %s4, 16, %s65, [#allocation9]
    $region21: #{tpu_custom_call.1} parent=1 // pred_fallthru
      _
    // Predicated region
    $region22: #{tpu_custom_call.1} parent=1 // pred_check
      _
    $region23: #{tpu_custom_call.1} parent=1 // pred_check_branch
      %69 = sbr.rel (0) target = $region25
    $region24: #{tpu_custom_call.1} parent=1 // pred_region
      %70 = dma.done [#allocation3], 1280
    $region25: #{tpu_custom_call.1} parent=1 // pred_fallthru
      _
    // Predicated region
    $region26: #{tpu_custom_call.1} parent=1 // pred_check
      _
    $region27: #{tpu_custom_call.1} parent=1 // pred_check_branch
      %72 = sbr.rel (0) target = $region29
    $region28: #{tpu_custom_call.1} parent=1 // pred_region
      %73 = dma.done [#allocation6], 51200
    $region29: #{tpu_custom_call.1} parent=1 // pred_fallthru
      _
    // Predicated region
    $region30: #{tpu_custom_call.1} parent=1 // pred_check
      _
    $region31: #{tpu_custom_call.1} parent=1 // pred_check_branch
      %75 = sbr.rel (0) target = $region33
    $region32: #{tpu_custom_call.1} parent=1 // pred_region
      %76 = dma.done [#allocation6], 80
    $region33: #{tpu_custom_call.1} parent=1 // pred_fallthru
      _
    // Predicated region
    $region34: #{tpu_custom_call.1} parent=1 // pred_check
      _
    $region35: #{tpu_custom_call.1} parent=1 // pred_check_branch
      %78 = sbr.rel (0) target = $region37
    $region36: #{tpu_custom_call.1} parent=1 // pred_region
      %79 = dma.done [#allocation9], 5120
    $region37: #{tpu_custom_call.1} parent=1 // pred_fallthru
      _
    // Predicated region
    $region38: #{tpu_custom_call.1} parent=1 // pred_check
      _
    $region39: #{tpu_custom_call.1} parent=1 // pred_check_branch
      %81 = sbr.rel (0) target = $region41
    $region40: #{tpu_custom_call.1} parent=1 // pred_region
      %82 = dma.done [#allocation9], 16
    $region41: #{tpu_custom_call.1} parent=1 // pred_fallthru
      _
    %v84 = vld [vmem:[#allocation2] sm:$0xff]
    %v85 = vld [vmem:[#allocation2 + $0x8] sm:$0xff]
    %v86 = vld [vmem:[#allocation2 + $0x10] sm:$0xff]
    %v87 = vld [vmem:[#allocation2 + $0x18] sm:$0xff]
    %v88 = vld [vmem:[#allocation2 + $0x20] sm:$0xff]
    %v89 = vld [vmem:[#allocation2 + $0x28] sm:$0xff]
    %v90 = vld [vmem:[#allocation2 + $0x30] sm:$0xff]
    %v91 = vld [vmem:[#allocation2 + $0x38] sm:$0xff]
    %v92 = vld [vmem:[#allocation2 + $0x40] sm:$0xff]
    %v93 = vld [vmem:[#allocation2 + $0x48] sm:$0xff]
    %v94 = vpack.c.bf16 %v84, %v84
    %v95 = vpack.c.bf16 %v85, %v85
    %v96 = vpack.c.bf16 %v86, %v86
    %v97 = vpack.c.bf16 %v87, %v87
    %v98 = vpack.c.bf16 %v88, %v88
    %v99 = vpack.c.bf16 %v89, %v89
    %v100 = vpack.c.bf16 %v90, %v90
    %v101 = vpack.c.bf16 %v91, %v91
    %v102 = vpack.c.bf16 %v92, %v92
    %v103 = vpack.c.bf16 %v93, %v93
    %v104 = vld [vmem:[#allocation5] sm:$0xff]
    %v105 = vld [vmem:[#allocation5 + $0x8] sm:$0xff]
    %v106 = vld [vmem:[#allocation5 + $0x10] sm:$0xf]
    %v107 = vld [vmem:[#allocation5 + $0x14] sm:$0xff]
    %v108 = vld [vmem:[#allocation5 + $0x1c] sm:$0xff]
    %v109 = vld [vmem:[#allocation5 + $0x24] sm:$0xf]
    %v110 = vld [vmem:[#allocation5 + $0x28] sm:$0xff]
    %v111 = vld [vmem:[#allocation5 + $0x30] sm:$0xff]
    %v112 = vld [vmem:[#allocation5 + $0x38] sm:$0xf]
    %v113 = vld [vmem:[#allocation5 + $0x3c] sm:$0xff]
    %v114 = vld [vmem:[#allocation5 + $0x44] sm:$0xff]
    %v115 = vld [vmem:[#allocation5 + $0x4c] sm:$0xf]
    %v116 = vld [vmem:[#allocation5 + $0x50] sm:$0xff]
    %v117 = vld [vmem:[#allocation5 + $0x58] sm:$0xff]
    %v118 = vld [vmem:[#allocation5 + $0x60] sm:$0xf]
    %v119 = vld [vmem:[#allocation5 + $0x64] sm:$0xff]
    %v120 = vld [vmem:[#allocation5 + $0x6c] sm:$0xff]
    %v121 = vld [vmem:[#allocation5 + $0x74] sm:$0xf]
    %v122 = vld [vmem:[#allocation5 + $0x78] sm:$0xff]
    %v123 = vld [vmem:[#allocation5 + $0x80] sm:$0xff]
    %v124 = vld [vmem:[#allocation5 + $0x88] sm:$0xf]
    %v125 = vld [vmem:[#allocation5 + $0x8c] sm:$0xff]
    %v126 = vld [vmem:[#allocation5 + $0x94] sm:$0xff]
    %v127 = vld [vmem:[#allocation5 + $0x9c] sm:$0xf]
    %v128 = vld [vmem:[#allocation5 + $0xa0] sm:$0xff]
    %v129 = vld [vmem:[#allocation5 + $0xa8] sm:$0xff]
    %v130 = vld [vmem:[#allocation5 + $0xb0] sm:$0xf]
    %v131 = vld [vmem:[#allocation5 + $0xb4] sm:$0xff]
    %v132 = vld [vmem:[#allocation5 + $0xbc] sm:$0xff]
    %v133 = vld [vmem:[#allocation5 + $0xc4] sm:$0xf]
    %v134 = vld [vmem:[#allocation5 + $0xc8] sm:$0xff]
    %v135 = vld [vmem:[#allocation5 + $0xd0] sm:$0xff]
    %v136 = vld [vmem:[#allocation5 + $0xd8] sm:$0xf]
    %v137 = vld [vmem:[#allocation5 + $0xdc] sm:$0xff]
    %v138 = vld [vmem:[#allocation5 + $0xe4] sm:$0xff]
    %v139 = vld [vmem:[#allocation5 + $0xec] sm:$0xf]
    %v140 = vld [vmem:[#allocation5 + $0xf0] sm:$0xff]
    %v141 = vld [vmem:[#allocation5 + $0xf8] sm:$0xff]
    %v142 = vld [vmem:[#allocation5 + $0x100] sm:$0xf]
    %v143 = vld [vmem:[#allocation5 + $0x104] sm:$0xff]
    %v144 = vld [vmem:[#allocation5 + $0x10c] sm:$0xff]
    %v145 = vld [vmem:[#allocation5 + $0x114] sm:$0xf]
    %v146 = vld [vmem:[#allocation5 + $0x118] sm:$0xff]
    %v147 = vld [vmem:[#allocation5 + $0x120] sm:$0xff]
    %v148 = vld [vmem:[#allocation5 + $0x128] sm:$0xf]
    %v149 = vld [vmem:[#allocation5 + $0x12c] sm:$0xff]
    %v150 = vld [vmem:[#allocation5 + $0x134] sm:$0xff]
    %v151 = vld [vmem:[#allocation5 + $0x13c] sm:$0xf]
    %v152 = vld [vmem:[#allocation5 + $0x140] sm:$0xff]
    %v153 = vld [vmem:[#allocation5 + $0x148] sm:$0xff]
    %v154 = vld [vmem:[#allocation5 + $0x150] sm:$0xf]
    %v155 = vld [vmem:[#allocation5 + $0x154] sm:$0xff]
    %v156 = vld [vmem:[#allocation5 + $0x15c] sm:$0xff]
    %v157 = vld [vmem:[#allocation5 + $0x164] sm:$0xf]
    %v158 = vld [vmem:[#allocation5 + $0x168] sm:$0xff]
    %v159 = vld [vmem:[#allocation5 + $0x170] sm:$0xff]
    %v160 = vld [vmem:[#allocation5 + $0x178] sm:$0xf]
    %v161 = vld [vmem:[#allocation5 + $0x17c] sm:$0xff]
    %v162 = vld [vmem:[#allocation5 + $0x184] sm:$0xff]
    %v163 = vld [vmem:[#allocation5 + $0x18c] sm:$0xf]
    %v164 = vld [vmem:[#allocation5 + $0x190] sm:$0xff]
    %v165 = vld [vmem:[#allocation5 + $0x198] sm:$0xff]
    %v166 = vld [vmem:[#allocation5 + $0x1a0] sm:$0xf]
    %v167 = vld [vmem:[#allocation5 + $0x1a4] sm:$0xff]
    %v168 = vld [vmem:[#allocation5 + $0x1ac] sm:$0xff]
    %v169 = vld [vmem:[#allocation5 + $0x1b4] sm:$0xf]
    %v170 = vld [vmem:[#allocation5 + $0x1b8] sm:$0xff]
    %v171 = vld [vmem:[#allocation5 + $0x1c0] sm:$0xff]
    %v172 = vld [vmem:[#allocation5 + $0x1c8] sm:$0xf]
    %v173 = vld [vmem:[#allocation5 + $0x1cc] sm:$0xff]
    %v174 = vld [vmem:[#allocation5 + $0x1d4] sm:$0xff]
    %v175 = vld [vmem:[#allocation5 + $0x1dc] sm:$0xf]
    %v176 = vld [vmem:[#allocation5 + $0x1e0] sm:$0xff]
    %v177 = vld [vmem:[#allocation5 + $0x1e8] sm:$0xff]
    %v178 = vld [vmem:[#allocation5 + $0x1f0] sm:$0xf]
    %v179 = vld [vmem:[#allocation5 + $0x1f4] sm:$0xff]
    %v180 = vld [vmem:[#allocation5 + $0x1fc] sm:$0xff]
    %v181 = vld [vmem:[#allocation5 + $0x204] sm:$0xf]
    %v182 = vld [vmem:[#allocation5 + $0x208] sm:$0xff]
    %v183 = vld [vmem:[#allocation5 + $0x210] sm:$0xff]
    %v184 = vld [vmem:[#allocation5 + $0x218] sm:$0xf]
    %v185 = vld [vmem:[#allocation5 + $0x21c] sm:$0xff]
    %v186 = vld [vmem:[#allocation5 + $0x224] sm:$0xff]
    %v187 = vld [vmem:[#allocation5 + $0x22c] sm:$0xf]
    %v188 = vld [vmem:[#allocation5 + $0x230] sm:$0xff]
    %v189 = vld [vmem:[#allocation5 + $0x238] sm:$0xff]
    %v190 = vld [vmem:[#allocation5 + $0x240] sm:$0xf]
    %v191 = vld [vmem:[#allocation5 + $0x244] sm:$0xff]
    %v192 = vld [vmem:[#allocation5 + $0x24c] sm:$0xff]
    %v193 = vld [vmem:[#allocation5 + $0x254] sm:$0xf]
    %v194 = vld [vmem:[#allocation5 + $0x258] sm:$0xff]
    %v195 = vld [vmem:[#allocation5 + $0x260] sm:$0xff]
    %v196 = vld [vmem:[#allocation5 + $0x268] sm:$0xf]
    %v197 = vld [vmem:[#allocation5 + $0x26c] sm:$0xff]
    %v198 = vld [vmem:[#allocation5 + $0x274] sm:$0xff]
    %v199 = vld [vmem:[#allocation5 + $0x27c] sm:$0xf]
    %v200 = vld [vmem:[#allocation5 + $0x280] sm:$0xff]
    %v201 = vld [vmem:[#allocation5 + $0x288] sm:$0xff]
    %v202 = vld [vmem:[#allocation5 + $0x290] sm:$0xf]
    %v203 = vld [vmem:[#allocation5 + $0x294] sm:$0xff]
    %v204 = vld [vmem:[#allocation5 + $0x29c] sm:$0xff]
    %v205 = vld [vmem:[#allocation5 + $0x2a4] sm:$0xf]
    %v206 = vld [vmem:[#allocation5 + $0x2a8] sm:$0xff]
    %v207 = vld [vmem:[#allocation5 + $0x2b0] sm:$0xff]
    %v208 = vld [vmem:[#allocation5 + $0x2b8] sm:$0xf]
    %v209 = vld [vmem:[#allocation5 + $0x2bc] sm:$0xff]
    %v210 = vld [vmem:[#allocation5 + $0x2c4] sm:$0xff]
    %v211 = vld [vmem:[#allocation5 + $0x2cc] sm:$0xf]
    %v212 = vld [vmem:[#allocation5 + $0x2d0] sm:$0xff]
    %v213 = vld [vmem:[#allocation5 + $0x2d8] sm:$0xff]
    %v214 = vld [vmem:[#allocation5 + $0x2e0] sm:$0xf]
    %v215 = vld [vmem:[#allocation5 + $0x2e4] sm:$0xff]
    %v216 = vld [vmem:[#allocation5 + $0x2ec] sm:$0xff]
    %v217 = vld [vmem:[#allocation5 + $0x2f4] sm:$0xf]
    %v218 = vld [vmem:[#allocation5 + $0x2f8] sm:$0xff]
    %v219 = vld [vmem:[#allocation5 + $0x300] sm:$0xff]
    %v220 = vld [vmem:[#allocation5 + $0x308] sm:$0xf]
    %v221 = vld [vmem:[#allocation5 + $0x30c] sm:$0xff]
    %v222 = vld [vmem:[#allocation5 + $0x314] sm:$0xff]
    %v223 = vld [vmem:[#allocation5 + $0x31c] sm:$0xf]
    %v224 = vld [vmem:[#allocation5 + $0x320] sm:$0xff]
    %v225 = vld [vmem:[#allocation5 + $0x328] sm:$0xff]
    %v226 = vld [vmem:[#allocation5 + $0x330] sm:$0xf]
    %v227 = vld [vmem:[#allocation5 + $0x334] sm:$0xff]
    %v228 = vld [vmem:[#allocation5 + $0x33c] sm:$0xff]
    %v229 = vld [vmem:[#allocation5 + $0x344] sm:$0xf]
    %v230 = vld [vmem:[#allocation5 + $0x348] sm:$0xff]
    %v231 = vld [vmem:[#allocation5 + $0x350] sm:$0xff]
    %v232 = vld [vmem:[#allocation5 + $0x358] sm:$0xf]
    %v233 = vld [vmem:[#allocation5 + $0x35c] sm:$0xff]
    %v234 = vld [vmem:[#allocation5 + $0x364] sm:$0xff]
    %v235 = vld [vmem:[#allocation5 + $0x36c] sm:$0xf]
    %v236 = vld [vmem:[#allocation5 + $0x370] sm:$0xff]
    %v237 = vld [vmem:[#allocation5 + $0x378] sm:$0xff]
    %v238 = vld [vmem:[#allocation5 + $0x380] sm:$0xf]
    %v239 = vld [vmem:[#allocation5 + $0x384] sm:$0xff]
    %v240 = vld [vmem:[#allocation5 + $0x38c] sm:$0xff]
    %v241 = vld [vmem:[#allocation5 + $0x394] sm:$0xf]
    %v242 = vld [vmem:[#allocation5 + $0x398] sm:$0xff]
    %v243 = vld [vmem:[#allocation5 + $0x3a0] sm:$0xff]
    %v244 = vld [vmem:[#allocation5 + $0x3a8] sm:$0xf]
    %v245 = vld [vmem:[#allocation5 + $0x3ac] sm:$0xff]
    %v246 = vld [vmem:[#allocation5 + $0x3b4] sm:$0xff]
    %v247 = vld [vmem:[#allocation5 + $0x3bc] sm:$0xf]
    %v248 = vld [vmem:[#allocation5 + $0x3c0] sm:$0xff]
    %v249 = vld [vmem:[#allocation5 + $0x3c8] sm:$0xff]
    %v250 = vld [vmem:[#allocation5 + $0x3d0] sm:$0xf]
    %v251 = vld [vmem:[#allocation5 + $0x3d4] sm:$0xff]
    %v252 = vld [vmem:[#allocation5 + $0x3dc] sm:$0xff]
    %v253 = vld [vmem:[#allocation5 + $0x3e4] sm:$0xf]
    %v254 = vld [vmem:[#allocation5 + $0x3e8] sm:$0xff]
    %v255 = vld [vmem:[#allocation5 + $0x3f0] sm:$0xff]
    %v256 = vld [vmem:[#allocation5 + $0x3f8] sm:$0xf]
    %v257 = vld [vmem:[#allocation5 + $0x3fc] sm:$0xff]
    %v258 = vld [vmem:[#allocation5 + $0x404] sm:$0xff]
    %v259 = vld [vmem:[#allocation5 + $0x40c] sm:$0xf]
    %v260 = vld [vmem:[#allocation5 + $0x410] sm:$0xff]
    %v261 = vld [vmem:[#allocation5 + $0x418] sm:$0xff]
    %v262 = vld [vmem:[#allocation5 + $0x420] sm:$0xf]
    %v263 = vld [vmem:[#allocation5 + $0x424] sm:$0xff]
    %v264 = vld [vmem:[#allocation5 + $0x42c] sm:$0xff]
    %v265 = vld [vmem:[#allocation5 + $0x434] sm:$0xf]
    %v266 = vld [vmem:[#allocation5 + $0x438] sm:$0xff]
    %v267 = vld [vmem:[#allocation5 + $0x440] sm:$0xff]
    %v268 = vld [vmem:[#allocation5 + $0x448] sm:$0xf]
    %v269 = vld [vmem:[#allocation5 + $0x44c] sm:$0xff]
    %v270 = vld [vmem:[#allocation5 + $0x454] sm:$0xff]
    %v271 = vld [vmem:[#allocation5 + $0x45c] sm:$0xf]
    %v272 = vld [vmem:[#allocation5 + $0x460] sm:$0xff]
    %v273 = vld [vmem:[#allocation5 + $0x468] sm:$0xff]
    %v274 = vld [vmem:[#allocation5 + $0x470] sm:$0xf]
    %v275 = vld [vmem:[#allocation5 + $0x474] sm:$0xff]
    %v276 = vld [vmem:[#allocation5 + $0x47c] sm:$0xff]
    %v277 = vld [vmem:[#allocation5 + $0x484] sm:$0xf]
    %v278 = vld [vmem:[#allocation5 + $0x488] sm:$0xff]
    %v279 = vld [vmem:[#allocation5 + $0x490] sm:$0xff]
    %v280 = vld [vmem:[#allocation5 + $0x498] sm:$0xf]
    %v281 = vld [vmem:[#allocation5 + $0x49c] sm:$0xff]
    %v282 = vld [vmem:[#allocation5 + $0x4a4] sm:$0xff]
    %v283 = vld [vmem:[#allocation5 + $0x4ac] sm:$0xf]
    %v284 = vld [vmem:[#allocation5 + $0x4b0] sm:$0xff]
    %v285 = vld [vmem:[#allocation5 + $0x4b8] sm:$0xff]
    %v286 = vld [vmem:[#allocation5 + $0x4c0] sm:$0xf]
    %v287 = vld [vmem:[#allocation5 + $0x4c4] sm:$0xff]
    %v288 = vld [vmem:[#allocation5 + $0x4cc] sm:$0xff]
    %v289 = vld [vmem:[#allocation5 + $0x4d4] sm:$0xf]
    %v290 = vld [vmem:[#allocation5 + $0x4d8] sm:$0xff]
    %v291 = vld [vmem:[#allocation5 + $0x4e0] sm:$0xff]
    %v292 = vld [vmem:[#allocation5 + $0x4e8] sm:$0xf]
    %v293 = vld [vmem:[#allocation5 + $0x4ec] sm:$0xff]
    %v294 = vld [vmem:[#allocation5 + $0x4f4] sm:$0xff]
    %v295 = vld [vmem:[#allocation5 + $0x4fc] sm:$0xf]
    %v296 = vld [vmem:[#allocation5 + $0x500] sm:$0xff]
    %v297 = vld [vmem:[#allocation5 + $0x508] sm:$0xff]
    %v298 = vld [vmem:[#allocation5 + $0x510] sm:$0xf]
    %v299 = vld [vmem:[#allocation5 + $0x514] sm:$0xff]
    %v300 = vld [vmem:[#allocation5 + $0x51c] sm:$0xff]
    %v301 = vld [vmem:[#allocation5 + $0x524] sm:$0xf]
    %v302 = vld [vmem:[#allocation5 + $0x528] sm:$0xff]
    %v303 = vld [vmem:[#allocation5 + $0x530] sm:$0xff]
    %v304 = vld [vmem:[#allocation5 + $0x538] sm:$0xf]
    %v305 = vld [vmem:[#allocation5 + $0x53c] sm:$0xff]
    %v306 = vld [vmem:[#allocation5 + $0x544] sm:$0xff]
    %v307 = vld [vmem:[#allocation5 + $0x54c] sm:$0xf]
    %v308 = vld [vmem:[#allocation5 + $0x550] sm:$0xff]
    %v309 = vld [vmem:[#allocation5 + $0x558] sm:$0xff]
    %v310 = vld [vmem:[#allocation5 + $0x560] sm:$0xf]
    %v311 = vld [vmem:[#allocation5 + $0x564] sm:$0xff]
    %v312 = vld [vmem:[#allocation5 + $0x56c] sm:$0xff]
    %v313 = vld [vmem:[#allocation5 + $0x574] sm:$0xf]
    %v314 = vld [vmem:[#allocation5 + $0x578] sm:$0xff]
    %v315 = vld [vmem:[#allocation5 + $0x580] sm:$0xff]
    %v316 = vld [vmem:[#allocation5 + $0x588] sm:$0xf]
    %v317 = vld [vmem:[#allocation5 + $0x58c] sm:$0xff]
    %v318 = vld [vmem:[#allocation5 + $0x594] sm:$0xff]
    %v319 = vld [vmem:[#allocation5 + $0x59c] sm:$0xf]
    %v320 = vld [vmem:[#allocation5 + $0x5a0] sm:$0xff]
    %v321 = vld [vmem:[#allocation5 + $0x5a8] sm:$0xff]
    %v322 = vld [vmem:[#allocation5 + $0x5b0] sm:$0xf]
    %v323 = vld [vmem:[#allocation5 + $0x5b4] sm:$0xff]
    %v324 = vld [vmem:[#allocation5 + $0x5bc] sm:$0xff]
    %v325 = vld [vmem:[#allocation5 + $0x5c4] sm:$0xf]
    %v326 = vld [vmem:[#allocation5 + $0x5c8] sm:$0xff]
    %v327 = vld [vmem:[#allocation5 + $0x5d0] sm:$0xff]
    %v328 = vld [vmem:[#allocation5 + $0x5d8] sm:$0xf]
    %v329 = vld [vmem:[#allocation5 + $0x5dc] sm:$0xff]
    %v330 = vld [vmem:[#allocation5 + $0x5e4] sm:$0xff]
    %v331 = vld [vmem:[#allocation5 + $0x5ec] sm:$0xf]
    %v332 = vld [vmem:[#allocation5 + $0x5f0] sm:$0xff]
    %v333 = vld [vmem:[#allocation5 + $0x5f8] sm:$0xff]
    %v334 = vld [vmem:[#allocation5 + $0x600] sm:$0xf]
    %v335 = vld [vmem:[#allocation5 + $0x604] sm:$0xff]
    %v336 = vld [vmem:[#allocation5 + $0x60c] sm:$0xff]
    %v337 = vld [vmem:[#allocation5 + $0x614] sm:$0xf]
    %v338 = vld [vmem:[#allocation5 + $0x618] sm:$0xff]
    %v339 = vld [vmem:[#allocation5 + $0x620] sm:$0xff]
    %v340 = vld [vmem:[#allocation5 + $0x628] sm:$0xf]
    %v341 = vld [vmem:[#allocation5 + $0x62c] sm:$0xff]
    %v342 = vld [vmem:[#allocation5 + $0x634] sm:$0xff]
    %v343 = vld [vmem:[#allocation5 + $0x63c] sm:$0xf]
    %v344 = vld [vmem:[#allocation5 + $0x640] sm:$0xff]
    %v345 = vld [vmem:[#allocation5 + $0x648] sm:$0xff]
    %v346 = vld [vmem:[#allocation5 + $0x650] sm:$0xf]
    %v347 = vld [vmem:[#allocation5 + $0x654] sm:$0xff]
    %v348 = vld [vmem:[#allocation5 + $0x65c] sm:$0xff]
    %v349 = vld [vmem:[#allocation5 + $0x664] sm:$0xf]
    %v350 = vld [vmem:[#allocation5 + $0x668] sm:$0xff]
    %v351 = vld [vmem:[#allocation5 + $0x670] sm:$0xff]
    %v352 = vld [vmem:[#allocation5 + $0x678] sm:$0xf]
    %v353 = vld [vmem:[#allocation5 + $0x67c] sm:$0xff]
    %v354 = vld [vmem:[#allocation5 + $0x684] sm:$0xff]
    %v355 = vld [vmem:[#allocation5 + $0x68c] sm:$0xf]
    %v356 = vld [vmem:[#allocation5 + $0x690] sm:$0xff]
    %v357 = vld [vmem:[#allocation5 + $0x698] sm:$0xff]
    %v358 = vld [vmem:[#allocation5 + $0x6a0] sm:$0xf]
    %v359 = vld [vmem:[#allocation5 + $0x6a4] sm:$0xff]
    %v360 = vld [vmem:[#allocation5 + $0x6ac] sm:$0xff]
    %v361 = vld [vmem:[#allocation5 + $0x6b4] sm:$0xf]
    %v362 = vld [vmem:[#allocation5 + $0x6b8] sm:$0xff]
    %v363 = vld [vmem:[#allocation5 + $0x6c0] sm:$0xff]
    %v364 = vld [vmem:[#allocation5 + $0x6c8] sm:$0xf]
    %v365 = vld [vmem:[#allocation5 + $0x6cc] sm:$0xff]
    %v366 = vld [vmem:[#allocation5 + $0x6d4] sm:$0xff]
    %v367 = vld [vmem:[#allocation5 + $0x6dc] sm:$0xf]
    %v368 = vld [vmem:[#allocation5 + $0x6e0] sm:$0xff]
    %v369 = vld [vmem:[#allocation5 + $0x6e8] sm:$0xff]
    %v370 = vld [vmem:[#allocation5 + $0x6f0] sm:$0xf]
    %v371 = vld [vmem:[#allocation5 + $0x6f4] sm:$0xff]
    %v372 = vld [vmem:[#allocation5 + $0x6fc] sm:$0xff]
    %v373 = vld [vmem:[#allocation5 + $0x704] sm:$0xf]
    %v374 = vld [vmem:[#allocation5 + $0x708] sm:$0xff]
    %v375 = vld [vmem:[#allocation5 + $0x710] sm:$0xff]
    %v376 = vld [vmem:[#allocation5 + $0x718] sm:$0xf]
    %v377 = vld [vmem:[#allocation5 + $0x71c] sm:$0xff]
    %v378 = vld [vmem:[#allocation5 + $0x724] sm:$0xff]
    %v379 = vld [vmem:[#allocation5 + $0x72c] sm:$0xf]
    %v380 = vld [vmem:[#allocation5 + $0x730] sm:$0xff]
    %v381 = vld [vmem:[#allocation5 + $0x738] sm:$0xff]
    %v382 = vld [vmem:[#allocation5 + $0x740] sm:$0xf]
    %v383 = vld [vmem:[#allocation5 + $0x744] sm:$0xff]
    %v384 = vld [vmem:[#allocation5 + $0x74c] sm:$0xff]
    %v385 = vld [vmem:[#allocation5 + $0x754] sm:$0xf]
    %v386 = vld [vmem:[#allocation5 + $0x758] sm:$0xff]
    %v387 = vld [vmem:[#allocation5 + $0x760] sm:$0xff]
    %v388 = vld [vmem:[#allocation5 + $0x768] sm:$0xf]
    %v389 = vld [vmem:[#allocation5 + $0x76c] sm:$0xff]
    %v390 = vld [vmem:[#allocation5 + $0x774] sm:$0xff]
    %v391 = vld [vmem:[#allocation5 + $0x77c] sm:$0xf]
    %v392 = vld [vmem:[#allocation5 + $0x780] sm:$0xff]
    %v393 = vld [vmem:[#allocation5 + $0x788] sm:$0xff]
    %v394 = vld [vmem:[#allocation5 + $0x790] sm:$0xf]
    %v395 = vld [vmem:[#allocation5 + $0x794] sm:$0xff]
    %v396 = vld [vmem:[#allocation5 + $0x79c] sm:$0xff]
    %v397 = vld [vmem:[#allocation5 + $0x7a4] sm:$0xf]
    %v398 = vld [vmem:[#allocation5 + $0x7a8] sm:$0xff]
    %v399 = vld [vmem:[#allocation5 + $0x7b0] sm:$0xff]
    %v400 = vld [vmem:[#allocation5 + $0x7b8] sm:$0xf]
    %v401 = vld [vmem:[#allocation5 + $0x7bc] sm:$0xff]
    %v402 = vld [vmem:[#allocation5 + $0x7c4] sm:$0xff]
    %v403 = vld [vmem:[#allocation5 + $0x7cc] sm:$0xf]
    %v404 = vld [vmem:[#allocation5 + $0x7d0] sm:$0xff]
    %v405 = vld [vmem:[#allocation5 + $0x7d8] sm:$0xff]
    %v406 = vld [vmem:[#allocation5 + $0x7e0] sm:$0xf]
    %v407 = vld [vmem:[#allocation5 + $0x7e4] sm:$0xff]
    %v408 = vld [vmem:[#allocation5 + $0x7ec] sm:$0xff]
    %v409 = vld [vmem:[#allocation5 + $0x7f4] sm:$0xf]
    %v410 = vld [vmem:[#allocation5 + $0x7f8] sm:$0xff]
    %v411 = vld [vmem:[#allocation5 + $0x800] sm:$0xff]
    %v412 = vld [vmem:[#allocation5 + $0x808] sm:$0xf]
    %v413 = vld [vmem:[#allocation5 + $0x80c] sm:$0xff]
    %v414 = vld [vmem:[#allocation5 + $0x814] sm:$0xff]
    %v415 = vld [vmem:[#allocation5 + $0x81c] sm:$0xf]
    %v416 = vld [vmem:[#allocation5 + $0x820] sm:$0xff]
    %v417 = vld [vmem:[#allocation5 + $0x828] sm:$0xff]
    %v418 = vld [vmem:[#allocation5 + $0x830] sm:$0xf]
    %v419 = vld [vmem:[#allocation5 + $0x834] sm:$0xff]
    %v420 = vld [vmem:[#allocation5 + $0x83c] sm:$0xff]
    %v421 = vld [vmem:[#allocation5 + $0x844] sm:$0xf]
    %v422 = vld [vmem:[#allocation5 + $0x848] sm:$0xff]
    %v423 = vld [vmem:[#allocation5 + $0x850] sm:$0xff]
    %v424 = vld [vmem:[#allocation5 + $0x858] sm:$0xf]
    %v425 = vld [vmem:[#allocation5 + $0x85c] sm:$0xff]
    %v426 = vld [vmem:[#allocation5 + $0x864] sm:$0xff]
    %v427 = vld [vmem:[#allocation5 + $0x86c] sm:$0xf]
    %v428 = vld [vmem:[#allocation5 + $0x870] sm:$0xff]
    %v429 = vld [vmem:[#allocation5 + $0x878] sm:$0xff]
    %v430 = vld [vmem:[#allocation5 + $0x880] sm:$0xf]
    %v431 = vld [vmem:[#allocation5 + $0x884] sm:$0xff]
    %v432 = vld [vmem:[#allocation5 + $0x88c] sm:$0xff]
    %v433 = vld [vmem:[#allocation5 + $0x894] sm:$0xf]
    %v434 = vld [vmem:[#allocation5 + $0x898] sm:$0xff]
    %v435 = vld [vmem:[#allocation5 + $0x8a0] sm:$0xff]
    %v436 = vld [vmem:[#allocation5 + $0x8a8] sm:$0xf]
    %v437 = vld [vmem:[#allocation5 + $0x8ac] sm:$0xff]
    %v438 = vld [vmem:[#allocation5 + $0x8b4] sm:$0xff]
    %v439 = vld [vmem:[#allocation5 + $0x8bc] sm:$0xf]
    %v440 = vld [vmem:[#allocation5 + $0x8c0] sm:$0xff]
    %v441 = vld [vmem:[#allocation5 + $0x8c8] sm:$0xff]
    %v442 = vld [vmem:[#allocation5 + $0x8d0] sm:$0xf]
    %v443 = vld [vmem:[#allocation5 + $0x8d4] sm:$0xff]
    %v444 = vld [vmem:[#allocation5 + $0x8dc] sm:$0xff]
    %v445 = vld [vmem:[#allocation5 + $0x8e4] sm:$0xf]
    %v446 = vld [vmem:[#allocation5 + $0x8e8] sm:$0xff]
    %v447 = vld [vmem:[#allocation5 + $0x8f0] sm:$0xff]
    %v448 = vld [vmem:[#allocation5 + $0x8f8] sm:$0xf]
    %v449 = vld [vmem:[#allocation5 + $0x8fc] sm:$0xff]
    %v450 = vld [vmem:[#allocation5 + $0x904] sm:$0xff]
    %v451 = vld [vmem:[#allocation5 + $0x90c] sm:$0xf]
    %v452 = vld [vmem:[#allocation5 + $0x910] sm:$0xff]
    %v453 = vld [vmem:[#allocation5 + $0x918] sm:$0xff]
    %v454 = vld [vmem:[#allocation5 + $0x920] sm:$0xf]
    %v455 = vld [vmem:[#allocation5 + $0x924] sm:$0xff]
    %v456 = vld [vmem:[#allocation5 + $0x92c] sm:$0xff]
    %v457 = vld [vmem:[#allocation5 + $0x934] sm:$0xf]
    %v458 = vld [vmem:[#allocation5 + $0x938] sm:$0xff]
    %v459 = vld [vmem:[#allocation5 + $0x940] sm:$0xff]
    %v460 = vld [vmem:[#allocation5 + $0x948] sm:$0xf]
    %v461 = vld [vmem:[#allocation5 + $0x94c] sm:$0xff]
    %v462 = vld [vmem:[#allocation5 + $0x954] sm:$0xff]
    %v463 = vld [vmem:[#allocation5 + $0x95c] sm:$0xf]
    %v464 = vld [vmem:[#allocation5 + $0x960] sm:$0xff]
    %v465 = vld [vmem:[#allocation5 + $0x968] sm:$0xff]
    %v466 = vld [vmem:[#allocation5 + $0x970] sm:$0xf]
    %v467 = vld [vmem:[#allocation5 + $0x974] sm:$0xff]
    %v468 = vld [vmem:[#allocation5 + $0x97c] sm:$0xff]
    %v469 = vld [vmem:[#allocation5 + $0x984] sm:$0xf]
    %v470 = vld [vmem:[#allocation5 + $0x988] sm:$0xff]
    %v471 = vld [vmem:[#allocation5 + $0x990] sm:$0xff]
    %v472 = vld [vmem:[#allocation5 + $0x998] sm:$0xf]
    %v473 = vld [vmem:[#allocation5 + $0x99c] sm:$0xff]
    %v474 = vld [vmem:[#allocation5 + $0x9a4] sm:$0xff]
    %v475 = vld [vmem:[#allocation5 + $0x9ac] sm:$0xf]
    %v476 = vld [vmem:[#allocation5 + $0x9b0] sm:$0xff]
    %v477 = vld [vmem:[#allocation5 + $0x9b8] sm:$0xff]
    %v478 = vld [vmem:[#allocation5 + $0x9c0] sm:$0xf]
    %v479 = vld [vmem:[#allocation5 + $0x9c4] sm:$0xff]
    %v480 = vld [vmem:[#allocation5 + $0x9cc] sm:$0xff]
    %v481 = vld [vmem:[#allocation5 + $0x9d4] sm:$0xf]
    %v482 = vld [vmem:[#allocation5 + $0x9d8] sm:$0xff]
    %v483 = vld [vmem:[#allocation5 + $0x9e0] sm:$0xff]
    %v484 = vld [vmem:[#allocation5 + $0x9e8] sm:$0xf]
    %v485 = vld [vmem:[#allocation5 + $0x9ec] sm:$0xff]
    %v486 = vld [vmem:[#allocation5 + $0x9f4] sm:$0xff]
    %v487 = vld [vmem:[#allocation5 + $0x9fc] sm:$0xf]
    %v488 = vld [vmem:[#allocation5 + $0xa00] sm:$0xff]
    %v489 = vld [vmem:[#allocation5 + $0xa08] sm:$0xff]
    %v490 = vld [vmem:[#allocation5 + $0xa10] sm:$0xf]
    %v491 = vld [vmem:[#allocation5 + $0xa14] sm:$0xff]
    %v492 = vld [vmem:[#allocation5 + $0xa1c] sm:$0xff]
    %v493 = vld [vmem:[#allocation5 + $0xa24] sm:$0xf]
    %v494 = vld [vmem:[#allocation5 + $0xa28] sm:$0xff]
    %v495 = vld [vmem:[#allocation5 + $0xa30] sm:$0xff]
    %v496 = vld [vmem:[#allocation5 + $0xa38] sm:$0xf]
    %v497 = vld [vmem:[#allocation5 + $0xa3c] sm:$0xff]
    %v498 = vld [vmem:[#allocation5 + $0xa44] sm:$0xff]
    %v499 = vld [vmem:[#allocation5 + $0xa4c] sm:$0xf]
    %v500 = vld [vmem:[#allocation5 + $0xa50] sm:$0xff]
    %v501 = vld [vmem:[#allocation5 + $0xa58] sm:$0xff]
    %v502 = vld [vmem:[#allocation5 + $0xa60] sm:$0xf]
    %v503 = vld [vmem:[#allocation5 + $0xa64] sm:$0xff]
    %v504 = vld [vmem:[#allocation5 + $0xa6c] sm:$0xff]
    %v505 = vld [vmem:[#allocation5 + $0xa74] sm:$0xf]
    %v506 = vld [vmem:[#allocation5 + $0xa78] sm:$0xff]
    %v507 = vld [vmem:[#allocation5 + $0xa80] sm:$0xff]
    %v508 = vld [vmem:[#allocation5 + $0xa88] sm:$0xf]
    %v509 = vld [vmem:[#allocation5 + $0xa8c] sm:$0xff]
    %v510 = vld [vmem:[#allocation5 + $0xa94] sm:$0xff]
    %v511 = vld [vmem:[#allocation5 + $0xa9c] sm:$0xf]
    %v512 = vld [vmem:[#allocation5 + $0xaa0] sm:$0xff]
    %v513 = vld [vmem:[#allocation5 + $0xaa8] sm:$0xff]
    %v514 = vld [vmem:[#allocation5 + $0xab0] sm:$0xf]
    %v515 = vld [vmem:[#allocation5 + $0xab4] sm:$0xff]
    %v516 = vld [vmem:[#allocation5 + $0xabc] sm:$0xff]
    %v517 = vld [vmem:[#allocation5 + $0xac4] sm:$0xf]
    %v518 = vld [vmem:[#allocation5 + $0xac8] sm:$0xff]
    %v519 = vld [vmem:[#allocation5 + $0xad0] sm:$0xff]
    %v520 = vld [vmem:[#allocation5 + $0xad8] sm:$0xf]
    %v521 = vld [vmem:[#allocation5 + $0xadc] sm:$0xff]
    %v522 = vld [vmem:[#allocation5 + $0xae4] sm:$0xff]
    %v523 = vld [vmem:[#allocation5 + $0xaec] sm:$0xf]
    %v524 = vld [vmem:[#allocation5 + $0xaf0] sm:$0xff]
    %v525 = vld [vmem:[#allocation5 + $0xaf8] sm:$0xff]
    %v526 = vld [vmem:[#allocation5 + $0xb00] sm:$0xf]
    %v527 = vld [vmem:[#allocation5 + $0xb04] sm:$0xff]
    %v528 = vld [vmem:[#allocation5 + $0xb0c] sm:$0xff]
    %v529 = vld [vmem:[#allocation5 + $0xb14] sm:$0xf]
    %v530 = vld [vmem:[#allocation5 + $0xb18] sm:$0xff]
    %v531 = vld [vmem:[#allocation5 + $0xb20] sm:$0xff]
    %v532 = vld [vmem:[#allocation5 + $0xb28] sm:$0xf]
    %v533 = vld [vmem:[#allocation5 + $0xb2c] sm:$0xff]
    %v534 = vld [vmem:[#allocation5 + $0xb34] sm:$0xff]
    %v535 = vld [vmem:[#allocation5 + $0xb3c] sm:$0xf]
    %v536 = vld [vmem:[#allocation5 + $0xb40] sm:$0xff]
    %v537 = vld [vmem:[#allocation5 + $0xb48] sm:$0xff]
    %v538 = vld [vmem:[#allocation5 + $0xb50] sm:$0xf]
    %v539 = vld [vmem:[#allocation5 + $0xb54] sm:$0xff]
    %v540 = vld [vmem:[#allocation5 + $0xb5c] sm:$0xff]
    %v541 = vld [vmem:[#allocation5 + $0xb64] sm:$0xf]
    %v542 = vld [vmem:[#allocation5 + $0xb68] sm:$0xff]
    %v543 = vld [vmem:[#allocation5 + $0xb70] sm:$0xff]
    %v544 = vld [vmem:[#allocation5 + $0xb78] sm:$0xf]
    %v545 = vld [vmem:[#allocation5 + $0xb7c] sm:$0xff]
    %v546 = vld [vmem:[#allocation5 + $0xb84] sm:$0xff]
    %v547 = vld [vmem:[#allocation5 + $0xb8c] sm:$0xf]
    %v548 = vld [vmem:[#allocation5 + $0xb90] sm:$0xff]
    %v549 = vld [vmem:[#allocation5 + $0xb98] sm:$0xff]
    %v550 = vld [vmem:[#allocation5 + $0xba0] sm:$0xf]
    %v551 = vld [vmem:[#allocation5 + $0xba4] sm:$0xff]
    %v552 = vld [vmem:[#allocation5 + $0xbac] sm:$0xff]
    %v553 = vld [vmem:[#allocation5 + $0xbb4] sm:$0xf]
    %v554 = vld [vmem:[#allocation5 + $0xbb8] sm:$0xff]
    %v555 = vld [vmem:[#allocation5 + $0xbc0] sm:$0xff]
    %v556 = vld [vmem:[#allocation5 + $0xbc8] sm:$0xf]
    %v557 = vld [vmem:[#allocation5 + $0xbcc] sm:$0xff]
    %v558 = vld [vmem:[#allocation5 + $0xbd4] sm:$0xff]
    %v559 = vld [vmem:[#allocation5 + $0xbdc] sm:$0xf]
    %v560 = vld [vmem:[#allocation5 + $0xbe0] sm:$0xff]
    %v561 = vld [vmem:[#allocation5 + $0xbe8] sm:$0xff]
    %v562 = vld [vmem:[#allocation5 + $0xbf0] sm:$0xf]
    %v563 = vld [vmem:[#allocation5 + $0xbf4] sm:$0xff]
    %v564 = vld [vmem:[#allocation5 + $0xbfc] sm:$0xff]
    %v565 = vld [vmem:[#allocation5 + $0xc04] sm:$0xf]
    %v566 = vld [vmem:[#allocation5 + $0xc08] sm:$0xff]
    %v567 = vld [vmem:[#allocation5 + $0xc10] sm:$0xff]
    %v568 = vld [vmem:[#allocation5 + $0xc18] sm:$0xf]
    %v569 = vld [vmem:[#allocation5 + $0xc1c] sm:$0xff]
    %v570 = vld [vmem:[#allocation5 + $0xc24] sm:$0xff]
    %v571 = vld [vmem:[#allocation5 + $0xc2c] sm:$0xf]
    %v572 = vld [vmem:[#allocation5 + $0xc30] sm:$0xff]
    %v573 = vld [vmem:[#allocation5 + $0xc38] sm:$0xff]
    %v574 = vld [vmem:[#allocation5 + $0xc40] sm:$0xf]
    %v575 = vld [vmem:[#allocation5 + $0xc44] sm:$0xff]
    %v576 = vld [vmem:[#allocation5 + $0xc4c] sm:$0xff]
    %v577 = vld [vmem:[#allocation5 + $0xc54] sm:$0xf]
    %v578 = vld [vmem:[#allocation5 + $0xc58] sm:$0xff]
    %v579 = vld [vmem:[#allocation5 + $0xc60] sm:$0xff]
    %v580 = vld [vmem:[#allocation5 + $0xc68] sm:$0xf]
    %v581 = vld [vmem:[#allocation5 + $0xc6c] sm:$0xff]
    %v582 = vld [vmem:[#allocation5 + $0xc74] sm:$0xff]
    %v583 = vld [vmem:[#allocation5 + $0xc7c] sm:$0xf]
    %v584 = vld [vmem:[#allocation7] sm:$0x1f]
    %v586 = vlaneseq
    %v587 = vshrl.u32 %v586, 7
    %v588 = vsub.s32 0, %v587
    %v589 = vrot.slane %v584, %v588
    %v590 = vlaneseq
    %v591 = vshrl.u32 %v590, 7
    %v592 = vsub.s32 1, %v591
    %v593 = vrot.slane %v584, %v592
    %v594 = vlaneseq
    %v595 = vshrl.u32 %v594, 7
    %v596 = vsub.s32 2, %v595
    %v597 = vrot.slane %v584, %v596
    %v598 = vlaneseq
    %v599 = vshrl.u32 %v598, 7
    %v600 = vsub.s32 3, %v599
    %v601 = vrot.slane %v584, %v600
    %v602 = vlaneseq
    %v603 = vshrl.u32 %v602, 7
    %v604 = vsub.s32 4, %v603
    %v605 = vrot.slane %v584, %v604
    %v1091 = vunpack.c.l.b16 %v104
    %v1092 = vunpack.c.h.b16 %v104
    %v1093 = vunpack.c.l.b16 %v105
    %v1094 = vunpack.c.h.b16 %v105
    %v1095 = vunpack.c.l.b16 %v106
    %v1096 = vunpack.c.l.b16 %v107
    %v1097 = vunpack.c.h.b16 %v107
    %v1098 = vunpack.c.l.b16 %v108
    %v1099 = vunpack.c.h.b16 %v108
    %v1100 = vunpack.c.l.b16 %v109
    %v1101 = vunpack.c.l.b16 %v110
    %v1102 = vunpack.c.h.b16 %v110
    %v1103 = vunpack.c.l.b16 %v111
    %v1104 = vunpack.c.h.b16 %v111
    %v1105 = vunpack.c.l.b16 %v112
    %v1106 = vunpack.c.l.b16 %v113
    %v1107 = vunpack.c.h.b16 %v113
    %v1108 = vunpack.c.l.b16 %v114
    %v1109 = vunpack.c.h.b16 %v114
    %v1110 = vunpack.c.l.b16 %v115
    %v1111 = vunpack.c.l.b16 %v116
    %v1112 = vunpack.c.h.b16 %v116
    %v1113 = vunpack.c.l.b16 %v117
    %v1114 = vunpack.c.h.b16 %v117
    %v1115 = vunpack.c.l.b16 %v118
    %v1116 = vunpack.c.l.b16 %v119
    %v1117 = vunpack.c.h.b16 %v119
    %v1118 = vunpack.c.l.b16 %v120
    %v1119 = vunpack.c.h.b16 %v120
    %v1120 = vunpack.c.l.b16 %v121
    %v1121 = vunpack.c.l.b16 %v122
    %v1122 = vunpack.c.h.b16 %v122
    %v1123 = vunpack.c.l.b16 %v123
    %v1124 = vunpack.c.h.b16 %v123
    %v1125 = vunpack.c.l.b16 %v124
    %v1126 = vunpack.c.l.b16 %v125
    %v1127 = vunpack.c.h.b16 %v125
    %v1128 = vunpack.c.l.b16 %v126
    %v1129 = vunpack.c.h.b16 %v126
    %v1130 = vunpack.c.l.b16 %v127
    %v1131 = vunpack.c.l.b16 %v128
    %v1132 = vunpack.c.h.b16 %v128
    %v1133 = vunpack.c.l.b16 %v129
    %v1134 = vunpack.c.h.b16 %v129
    %v1135 = vunpack.c.l.b16 %v130
    %v1136 = vunpack.c.l.b16 %v131
    %v1137 = vunpack.c.h.b16 %v131
    %v1138 = vunpack.c.l.b16 %v132
    %v1139 = vunpack.c.h.b16 %v132
    %v1140 = vunpack.c.l.b16 %v133
    %v1141 = vunpack.c.l.b16 %v134
    %v1142 = vunpack.c.h.b16 %v134
    %v1143 = vunpack.c.l.b16 %v135
    %v1144 = vunpack.c.h.b16 %v135
    %v1145 = vunpack.c.l.b16 %v136
    %v1146 = vunpack.c.l.b16 %v137
    %v1147 = vunpack.c.h.b16 %v137
    %v1148 = vunpack.c.l.b16 %v138
    %v1149 = vunpack.c.h.b16 %v138
    %v1150 = vunpack.c.l.b16 %v139
    %v1151 = vunpack.c.l.b16 %v140
    %v1152 = vunpack.c.h.b16 %v140
    %v1153 = vunpack.c.l.b16 %v141
    %v1154 = vunpack.c.h.b16 %v141
    %v1155 = vunpack.c.l.b16 %v142
    %v1156 = vunpack.c.l.b16 %v143
    %v1157 = vunpack.c.h.b16 %v143
    %v1158 = vunpack.c.l.b16 %v144
    %v1159 = vunpack.c.h.b16 %v144
    %v1160 = vunpack.c.l.b16 %v145
    %v1161 = vunpack.c.l.b16 %v146
    %v1162 = vunpack.c.h.b16 %v146
    %v1163 = vunpack.c.l.b16 %v147
    %v1164 = vunpack.c.h.b16 %v147
    %v1165 = vunpack.c.l.b16 %v148
    %v1166 = vunpack.c.l.b16 %v149
    %v1167 = vunpack.c.h.b16 %v149
    %v1168 = vunpack.c.l.b16 %v150
    %v1169 = vunpack.c.h.b16 %v150
    %v1170 = vunpack.c.l.b16 %v151
    %v1171 = vunpack.c.l.b16 %v152
    %v1172 = vunpack.c.h.b16 %v152
    %v1173 = vunpack.c.l.b16 %v153
    %v1174 = vunpack.c.h.b16 %v153
    %v1175 = vunpack.c.l.b16 %v154
    %v1176 = vunpack.c.l.b16 %v155
    %v1177 = vunpack.c.h.b16 %v155
    %v1178 = vunpack.c.l.b16 %v156
    %v1179 = vunpack.c.h.b16 %v156
    %v1180 = vunpack.c.l.b16 %v157
    %v1181 = vunpack.c.l.b16 %v158
    %v1182 = vunpack.c.h.b16 %v158
    %v1183 = vunpack.c.l.b16 %v159
    %v1184 = vunpack.c.h.b16 %v159
    %v1185 = vunpack.c.l.b16 %v160
    %v1186 = vunpack.c.l.b16 %v161
    %v1187 = vunpack.c.h.b16 %v161
    %v1188 = vunpack.c.l.b16 %v162
    %v1189 = vunpack.c.h.b16 %v162
    %v1190 = vunpack.c.l.b16 %v163
    %v1191 = vunpack.c.l.b16 %v164
    %v1192 = vunpack.c.h.b16 %v164
    %v1193 = vunpack.c.l.b16 %v165
    %v1194 = vunpack.c.h.b16 %v165
    %v1195 = vunpack.c.l.b16 %v166
    %v1196 = vunpack.c.l.b16 %v167
    %v1197 = vunpack.c.h.b16 %v167
    %v1198 = vunpack.c.l.b16 %v168
    %v1199 = vunpack.c.h.b16 %v168
    %v1200 = vunpack.c.l.b16 %v169
    %v1201 = vunpack.c.l.b16 %v170
    %v1202 = vunpack.c.h.b16 %v170
    %v1203 = vunpack.c.l.b16 %v171
    %v1204 = vunpack.c.h.b16 %v171
    %v1205 = vunpack.c.l.b16 %v172
    %v1206 = vunpack.c.l.b16 %v173
    %v1207 = vunpack.c.h.b16 %v173
    %v1208 = vunpack.c.l.b16 %v174
    %v1209 = vunpack.c.h.b16 %v174
    %v1210 = vunpack.c.l.b16 %v175
    %v1211 = vunpack.c.l.b16 %v176
    %v1212 = vunpack.c.h.b16 %v176
    %v1213 = vunpack.c.l.b16 %v177
    %v1214 = vunpack.c.h.b16 %v177
    %v1215 = vunpack.c.l.b16 %v178
    %v1216 = vunpack.c.l.b16 %v179
    %v1217 = vunpack.c.h.b16 %v179
    %v1218 = vunpack.c.l.b16 %v180
    %v1219 = vunpack.c.h.b16 %v180
    %v1220 = vunpack.c.l.b16 %v181
    %v1221 = vunpack.c.l.b16 %v182
    %v1222 = vunpack.c.h.b16 %v182
    %v1223 = vunpack.c.l.b16 %v183
    %v1224 = vunpack.c.h.b16 %v183
    %v1225 = vunpack.c.l.b16 %v184
    %v1226 = vunpack.c.l.b16 %v185
    %v1227 = vunpack.c.h.b16 %v185
    %v1228 = vunpack.c.l.b16 %v186
    %v1229 = vunpack.c.h.b16 %v186
    %v1230 = vunpack.c.l.b16 %v187
    %v1231 = vunpack.c.l.b16 %v188
    %v1232 = vunpack.c.h.b16 %v188
    %v1233 = vunpack.c.l.b16 %v189
    %v1234 = vunpack.c.h.b16 %v189
    %v1235 = vunpack.c.l.b16 %v190
    %v1236 = vunpack.c.l.b16 %v191
    %v1237 = vunpack.c.h.b16 %v191
    %v1238 = vunpack.c.l.b16 %v192
    %v1239 = vunpack.c.h.b16 %v192
    %v1240 = vunpack.c.l.b16 %v193
    %v1241 = vunpack.c.l.b16 %v194
    %v1242 = vunpack.c.h.b16 %v194
    %v1243 = vunpack.c.l.b16 %v195
    %v1244 = vunpack.c.h.b16 %v195
    %v1245 = vunpack.c.l.b16 %v196
    %v1246 = vunpack.c.l.b16 %v197
    %v1247 = vunpack.c.h.b16 %v197
    %v1248 = vunpack.c.l.b16 %v198
    %v1249 = vunpack.c.h.b16 %v198
    %v1250 = vunpack.c.l.b16 %v199
    %v1251 = vunpack.c.l.b16 %v200
    %v1252 = vunpack.c.h.b16 %v200
    %v1253 = vunpack.c.l.b16 %v201
    %v1254 = vunpack.c.h.b16 %v201
    %v1255 = vunpack.c.l.b16 %v202
    %v1256 = vunpack.c.l.b16 %v203
    %v1257 = vunpack.c.h.b16 %v203
    %v1258 = vunpack.c.l.b16 %v204
    %v1259 = vunpack.c.h.b16 %v204
    %v1260 = vunpack.c.l.b16 %v205
    %v1261 = vunpack.c.l.b16 %v206
    %v1262 = vunpack.c.h.b16 %v206
    %v1263 = vunpack.c.l.b16 %v207
    %v1264 = vunpack.c.h.b16 %v207
    %v1265 = vunpack.c.l.b16 %v208
    %v1266 = vunpack.c.l.b16 %v209
    %v1267 = vunpack.c.h.b16 %v209
    %v1268 = vunpack.c.l.b16 %v210
    %v1269 = vunpack.c.h.b16 %v210
    %v1270 = vunpack.c.l.b16 %v211
    %v1271 = vunpack.c.l.b16 %v212
    %v1272 = vunpack.c.h.b16 %v212
    %v1273 = vunpack.c.l.b16 %v213
    %v1274 = vunpack.c.h.b16 %v213
    %v1275 = vunpack.c.l.b16 %v214
    %v1276 = vunpack.c.l.b16 %v215
    %v1277 = vunpack.c.h.b16 %v215
    %v1278 = vunpack.c.l.b16 %v216
    %v1279 = vunpack.c.h.b16 %v216
    %v1280 = vunpack.c.l.b16 %v217
    %v1281 = vunpack.c.l.b16 %v218
    %v1282 = vunpack.c.h.b16 %v218
    %v1283 = vunpack.c.l.b16 %v219
    %v1284 = vunpack.c.h.b16 %v219
    %v1285 = vunpack.c.l.b16 %v220
    %v1286 = vunpack.c.l.b16 %v221
    %v1287 = vunpack.c.h.b16 %v221
    %v1288 = vunpack.c.l.b16 %v222
    %v1289 = vunpack.c.h.b16 %v222
    %v1290 = vunpack.c.l.b16 %v223
    %v1291 = vunpack.c.l.b16 %v224
    %v1292 = vunpack.c.h.b16 %v224
    %v1293 = vunpack.c.l.b16 %v225
    %v1294 = vunpack.c.h.b16 %v225
    %v1295 = vunpack.c.l.b16 %v226
    %v1296 = vunpack.c.l.b16 %v227
    %v1297 = vunpack.c.h.b16 %v227
    %v1298 = vunpack.c.l.b16 %v228
    %v1299 = vunpack.c.h.b16 %v228
    %v1300 = vunpack.c.l.b16 %v229
    %v1301 = vunpack.c.l.b16 %v230
    %v1302 = vunpack.c.h.b16 %v230
    %v1303 = vunpack.c.l.b16 %v231
    %v1304 = vunpack.c.h.b16 %v231
    %v1305 = vunpack.c.l.b16 %v232
    %v1306 = vunpack.c.l.b16 %v233
    %v1307 = vunpack.c.h.b16 %v233
    %v1308 = vunpack.c.l.b16 %v234
    %v1309 = vunpack.c.h.b16 %v234
    %v1310 = vunpack.c.l.b16 %v235
    %v1311 = vunpack.c.l.b16 %v236
    %v1312 = vunpack.c.h.b16 %v236
    %v1313 = vunpack.c.l.b16 %v237
    %v1314 = vunpack.c.h.b16 %v237
    %v1315 = vunpack.c.l.b16 %v238
    %v1316 = vunpack.c.l.b16 %v239
    %v1317 = vunpack.c.h.b16 %v239
    %v1318 = vunpack.c.l.b16 %v240
    %v1319 = vunpack.c.h.b16 %v240
    %v1320 = vunpack.c.l.b16 %v241
    %v1321 = vunpack.c.l.b16 %v242
    %v1322 = vunpack.c.h.b16 %v242
    %v1323 = vunpack.c.l.b16 %v243
    %v1324 = vunpack.c.h.b16 %v243
    %v1325 = vunpack.c.l.b16 %v244
    %v1326 = vunpack.c.l.b16 %v245
    %v1327 = vunpack.c.h.b16 %v245
    %v1328 = vunpack.c.l.b16 %v246
    %v1329 = vunpack.c.h.b16 %v246
    %v1330 = vunpack.c.l.b16 %v247
    %v1331 = vunpack.c.l.b16 %v248
    %v1332 = vunpack.c.h.b16 %v248
    %v1333 = vunpack.c.l.b16 %v249
    %v1334 = vunpack.c.h.b16 %v249
    %v1335 = vunpack.c.l.b16 %v250
    %v1336 = vunpack.c.l.b16 %v251
    %v1337 = vunpack.c.h.b16 %v251
    %v1338 = vunpack.c.l.b16 %v252
    %v1339 = vunpack.c.h.b16 %v252
    %v1340 = vunpack.c.l.b16 %v253
    %v1341 = vunpack.c.l.b16 %v254
    %v1342 = vunpack.c.h.b16 %v254
    %v1343 = vunpack.c.l.b16 %v255
    %v1344 = vunpack.c.h.b16 %v255
    %v1345 = vunpack.c.l.b16 %v256
    %v1346 = vunpack.c.l.b16 %v257
    %v1347 = vunpack.c.h.b16 %v257
    %v1348 = vunpack.c.l.b16 %v258
    %v1349 = vunpack.c.h.b16 %v258
    %v1350 = vunpack.c.l.b16 %v259
    %v1351 = vunpack.c.l.b16 %v260
    %v1352 = vunpack.c.h.b16 %v260
    %v1353 = vunpack.c.l.b16 %v261
    %v1354 = vunpack.c.h.b16 %v261
    %v1355 = vunpack.c.l.b16 %v262
    %v1356 = vunpack.c.l.b16 %v263
    %v1357 = vunpack.c.h.b16 %v263
    %v1358 = vunpack.c.l.b16 %v264
    %v1359 = vunpack.c.h.b16 %v264
    %v1360 = vunpack.c.l.b16 %v265
    %v1361 = vunpack.c.l.b16 %v266
    %v1362 = vunpack.c.h.b16 %v266
    %v1363 = vunpack.c.l.b16 %v267
    %v1364 = vunpack.c.h.b16 %v267
    %v1365 = vunpack.c.l.b16 %v268
    %v1366 = vunpack.c.l.b16 %v269
    %v1367 = vunpack.c.h.b16 %v269
    %v1368 = vunpack.c.l.b16 %v270
    %v1369 = vunpack.c.h.b16 %v270
    %v1370 = vunpack.c.l.b16 %v271
    %v1371 = vunpack.c.l.b16 %v272
    %v1372 = vunpack.c.h.b16 %v272
    %v1373 = vunpack.c.l.b16 %v273
    %v1374 = vunpack.c.h.b16 %v273
    %v1375 = vunpack.c.l.b16 %v274
    %v1376 = vunpack.c.l.b16 %v275
    %v1377 = vunpack.c.h.b16 %v275
    %v1378 = vunpack.c.l.b16 %v276
    %v1379 = vunpack.c.h.b16 %v276
    %v1380 = vunpack.c.l.b16 %v277
    %v1381 = vunpack.c.l.b16 %v278
    %v1382 = vunpack.c.h.b16 %v278
    %v1383 = vunpack.c.l.b16 %v279
    %v1384 = vunpack.c.h.b16 %v279
    %v1385 = vunpack.c.l.b16 %v280
    %v1386 = vunpack.c.l.b16 %v281
    %v1387 = vunpack.c.h.b16 %v281
    %v1388 = vunpack.c.l.b16 %v282
    %v1389 = vunpack.c.h.b16 %v282
    %v1390 = vunpack.c.l.b16 %v283
    %v1391 = vunpack.c.l.b16 %v284
    %v1392 = vunpack.c.h.b16 %v284
    %v1393 = vunpack.c.l.b16 %v285
    %v1394 = vunpack.c.h.b16 %v285
    %v1395 = vunpack.c.l.b16 %v286
    %v1396 = vunpack.c.l.b16 %v287
    %v1397 = vunpack.c.h.b16 %v287
    %v1398 = vunpack.c.l.b16 %v288
    %v1399 = vunpack.c.h.b16 %v288
    %v1400 = vunpack.c.l.b16 %v289
    %v1401 = vunpack.c.l.b16 %v290
    %v1402 = vunpack.c.h.b16 %v290
    %v1403 = vunpack.c.l.b16 %v291
    %v1404 = vunpack.c.h.b16 %v291
    %v1405 = vunpack.c.l.b16 %v292
    %v1406 = vunpack.c.l.b16 %v293
    %v1407 = vunpack.c.h.b16 %v293
    %v1408 = vunpack.c.l.b16 %v294
    %v1409 = vunpack.c.h.b16 %v294
    %v1410 = vunpack.c.l.b16 %v295
    %v1411 = vunpack.c.l.b16 %v296
    %v1412 = vunpack.c.h.b16 %v296
    %v1413 = vunpack.c.l.b16 %v297
    %v1414 = vunpack.c.h.b16 %v297
    %v1415 = vunpack.c.l.b16 %v298
    %v1416 = vunpack.c.l.b16 %v299
    %v1417 = vunpack.c.h.b16 %v299
    %v1418 = vunpack.c.l.b16 %v300
    %v1419 = vunpack.c.h.b16 %v300
    %v1420 = vunpack.c.l.b16 %v301
    %v1421 = vunpack.c.l.b16 %v302
    %v1422 = vunpack.c.h.b16 %v302
    %v1423 = vunpack.c.l.b16 %v303
    %v1424 = vunpack.c.h.b16 %v303
    %v1425 = vunpack.c.l.b16 %v304
    %v1426 = vunpack.c.l.b16 %v305
    %v1427 = vunpack.c.h.b16 %v305
    %v1428 = vunpack.c.l.b16 %v306
    %v1429 = vunpack.c.h.b16 %v306
    %v1430 = vunpack.c.l.b16 %v307
    %v1431 = vunpack.c.l.b16 %v308
    %v1432 = vunpack.c.h.b16 %v308
    %v1433 = vunpack.c.l.b16 %v309
    %v1434 = vunpack.c.h.b16 %v309
    %v1435 = vunpack.c.l.b16 %v310
    %v1436 = vunpack.c.l.b16 %v311
    %v1437 = vunpack.c.h.b16 %v311
    %v1438 = vunpack.c.l.b16 %v312
    %v1439 = vunpack.c.h.b16 %v312
    %v1440 = vunpack.c.l.b16 %v313
    %v1441 = vunpack.c.l.b16 %v314
    %v1442 = vunpack.c.h.b16 %v314
    %v1443 = vunpack.c.l.b16 %v315
    %v1444 = vunpack.c.h.b16 %v315
    %v1445 = vunpack.c.l.b16 %v316
    %v1446 = vunpack.c.l.b16 %v317
    %v1447 = vunpack.c.h.b16 %v317
    %v1448 = vunpack.c.l.b16 %v318
    %v1449 = vunpack.c.h.b16 %v318
    %v1450 = vunpack.c.l.b16 %v319
    %v1451 = vunpack.c.l.b16 %v320
    %v1452 = vunpack.c.h.b16 %v320
    %v1453 = vunpack.c.l.b16 %v321
    %v1454 = vunpack.c.h.b16 %v321
    %v1455 = vunpack.c.l.b16 %v322
    %v1456 = vunpack.c.l.b16 %v323
    %v1457 = vunpack.c.h.b16 %v323
    %v1458 = vunpack.c.l.b16 %v324
    %v1459 = vunpack.c.h.b16 %v324
    %v1460 = vunpack.c.l.b16 %v325
    %v1461 = vunpack.c.l.b16 %v326
    %v1462 = vunpack.c.h.b16 %v326
    %v1463 = vunpack.c.l.b16 %v327
    %v1464 = vunpack.c.h.b16 %v327
    %v1465 = vunpack.c.l.b16 %v328
    %v1466 = vunpack.c.l.b16 %v329
    %v1467 = vunpack.c.h.b16 %v329
    %v1468 = vunpack.c.l.b16 %v330
    %v1469 = vunpack.c.h.b16 %v330
    %v1470 = vunpack.c.l.b16 %v331
    %v1471 = vunpack.c.l.b16 %v332
    %v1472 = vunpack.c.h.b16 %v332
    %v1473 = vunpack.c.l.b16 %v333
    %v1474 = vunpack.c.h.b16 %v333
    %v1475 = vunpack.c.l.b16 %v334
    %v1476 = vunpack.c.l.b16 %v335
    %v1477 = vunpack.c.h.b16 %v335
    %v1478 = vunpack.c.l.b16 %v336
    %v1479 = vunpack.c.h.b16 %v336
    %v1480 = vunpack.c.l.b16 %v337
    %v1481 = vunpack.c.l.b16 %v338
    %v1482 = vunpack.c.h.b16 %v338
    %v1483 = vunpack.c.l.b16 %v339
    %v1484 = vunpack.c.h.b16 %v339
    %v1485 = vunpack.c.l.b16 %v340
    %v1486 = vunpack.c.l.b16 %v341
    %v1487 = vunpack.c.h.b16 %v341
    %v1488 = vunpack.c.l.b16 %v342
    %v1489 = vunpack.c.h.b16 %v342
    %v1490 = vunpack.c.l.b16 %v343
    %v1491 = vunpack.c.l.b16 %v344
    %v1492 = vunpack.c.h.b16 %v344
    %v1493 = vunpack.c.l.b16 %v345
    %v1494 = vunpack.c.h.b16 %v345
    %v1495 = vunpack.c.l.b16 %v346
    %v1496 = vunpack.c.l.b16 %v347
    %v1497 = vunpack.c.h.b16 %v347
    %v1498 = vunpack.c.l.b16 %v348
    %v1499 = vunpack.c.h.b16 %v348
    %v1500 = vunpack.c.l.b16 %v349
    %v1501 = vunpack.c.l.b16 %v350
    %v1502 = vunpack.c.h.b16 %v350
    %v1503 = vunpack.c.l.b16 %v351
    %v1504 = vunpack.c.h.b16 %v351
    %v1505 = vunpack.c.l.b16 %v352
    %v1506 = vunpack.c.l.b16 %v353
    %v1507 = vunpack.c.h.b16 %v353
    %v1508 = vunpack.c.l.b16 %v354
    %v1509 = vunpack.c.h.b16 %v354
    %v1510 = vunpack.c.l.b16 %v355
    %v1511 = vunpack.c.l.b16 %v356
    %v1512 = vunpack.c.h.b16 %v356
    %v1513 = vunpack.c.l.b16 %v357
    %v1514 = vunpack.c.h.b16 %v357
    %v1515 = vunpack.c.l.b16 %v358
    %v1516 = vunpack.c.l.b16 %v359
    %v1517 = vunpack.c.h.b16 %v359
    %v1518 = vunpack.c.l.b16 %v360
    %v1519 = vunpack.c.h.b16 %v360
    %v1520 = vunpack.c.l.b16 %v361
    %v1521 = vunpack.c.l.b16 %v362
    %v1522 = vunpack.c.h.b16 %v362
    %v1523 = vunpack.c.l.b16 %v363
    %v1524 = vunpack.c.h.b16 %v363
    %v1525 = vunpack.c.l.b16 %v364
    %v1526 = vunpack.c.l.b16 %v365
    %v1527 = vunpack.c.h.b16 %v365
    %v1528 = vunpack.c.l.b16 %v366
    %v1529 = vunpack.c.h.b16 %v366
    %v1530 = vunpack.c.l.b16 %v367
    %v1531 = vunpack.c.l.b16 %v368
    %v1532 = vunpack.c.h.b16 %v368
    %v1533 = vunpack.c.l.b16 %v369
    %v1534 = vunpack.c.h.b16 %v369
    %v1535 = vunpack.c.l.b16 %v370
    %v1536 = vunpack.c.l.b16 %v371
    %v1537 = vunpack.c.h.b16 %v371
    %v1538 = vunpack.c.l.b16 %v372
    %v1539 = vunpack.c.h.b16 %v372
    %v1540 = vunpack.c.l.b16 %v373
    %v1541 = vunpack.c.l.b16 %v374
    %v1542 = vunpack.c.h.b16 %v374
    %v1543 = vunpack.c.l.b16 %v375
    %v1544 = vunpack.c.h.b16 %v375
    %v1545 = vunpack.c.l.b16 %v376
    %v1546 = vunpack.c.l.b16 %v377
    %v1547 = vunpack.c.h.b16 %v377
    %v1548 = vunpack.c.l.b16 %v378
    %v1549 = vunpack.c.h.b16 %v378
    %v1550 = vunpack.c.l.b16 %v379
    %v1551 = vunpack.c.l.b16 %v380
    %v1552 = vunpack.c.h.b16 %v380
    %v1553 = vunpack.c.l.b16 %v381
    %v1554 = vunpack.c.h.b16 %v381
    %v1555 = vunpack.c.l.b16 %v382
    %v1556 = vunpack.c.l.b16 %v383
    %v1557 = vunpack.c.h.b16 %v383
    %v1558 = vunpack.c.l.b16 %v384
    %v1559 = vunpack.c.h.b16 %v384
    %v1560 = vunpack.c.l.b16 %v385
    %v1561 = vunpack.c.l.b16 %v386
    %v1562 = vunpack.c.h.b16 %v386
    %v1563 = vunpack.c.l.b16 %v387
    %v1564 = vunpack.c.h.b16 %v387
    %v1565 = vunpack.c.l.b16 %v388
    %v1566 = vunpack.c.l.b16 %v389
    %v1567 = vunpack.c.h.b16 %v389
    %v1568 = vunpack.c.l.b16 %v390
    %v1569 = vunpack.c.h.b16 %v390
    %v1570 = vunpack.c.l.b16 %v391
    %v1571 = vunpack.c.l.b16 %v392
    %v1572 = vunpack.c.h.b16 %v392
    %v1573 = vunpack.c.l.b16 %v393
    %v1574 = vunpack.c.h.b16 %v393
    %v1575 = vunpack.c.l.b16 %v394
    %v1576 = vunpack.c.l.b16 %v395
    %v1577 = vunpack.c.h.b16 %v395
    %v1578 = vunpack.c.l.b16 %v396
    %v1579 = vunpack.c.h.b16 %v396
    %v1580 = vunpack.c.l.b16 %v397
    %v1581 = vunpack.c.l.b16 %v398
    %v1582 = vunpack.c.h.b16 %v398
    %v1583 = vunpack.c.l.b16 %v399
    %v1584 = vunpack.c.h.b16 %v399
    %v1585 = vunpack.c.l.b16 %v400
    %v1586 = vunpack.c.l.b16 %v401
    %v1587 = vunpack.c.h.b16 %v401
    %v1588 = vunpack.c.l.b16 %v402
    %v1589 = vunpack.c.h.b16 %v402
    %v1590 = vunpack.c.l.b16 %v403
    %v1591 = vunpack.c.l.b16 %v404
    %v1592 = vunpack.c.h.b16 %v404
    %v1593 = vunpack.c.l.b16 %v405
    %v1594 = vunpack.c.h.b16 %v405
    %v1595 = vunpack.c.l.b16 %v406
    %v1596 = vunpack.c.l.b16 %v407
    %v1597 = vunpack.c.h.b16 %v407
    %v1598 = vunpack.c.l.b16 %v408
    %v1599 = vunpack.c.h.b16 %v408
    %v1600 = vunpack.c.l.b16 %v409
    %v1601 = vunpack.c.l.b16 %v410
    %v1602 = vunpack.c.h.b16 %v410
    %v1603 = vunpack.c.l.b16 %v411
    %v1604 = vunpack.c.h.b16 %v411
    %v1605 = vunpack.c.l.b16 %v412
    %v1606 = vunpack.c.l.b16 %v413
    %v1607 = vunpack.c.h.b16 %v413
    %v1608 = vunpack.c.l.b16 %v414
    %v1609 = vunpack.c.h.b16 %v414
    %v1610 = vunpack.c.l.b16 %v415
    %v1611 = vunpack.c.l.b16 %v416
    %v1612 = vunpack.c.h.b16 %v416
    %v1613 = vunpack.c.l.b16 %v417
    %v1614 = vunpack.c.h.b16 %v417
    %v1615 = vunpack.c.l.b16 %v418
    %v1616 = vunpack.c.l.b16 %v419
    %v1617 = vunpack.c.h.b16 %v419
    %v1618 = vunpack.c.l.b16 %v420
    %v1619 = vunpack.c.h.b16 %v420
    %v1620 = vunpack.c.l.b16 %v421
    %v1621 = vunpack.c.l.b16 %v422
    %v1622 = vunpack.c.h.b16 %v422
    %v1623 = vunpack.c.l.b16 %v423
    %v1624 = vunpack.c.h.b16 %v423
    %v1625 = vunpack.c.l.b16 %v424
    %v1626 = vunpack.c.l.b16 %v425
    %v1627 = vunpack.c.h.b16 %v425
    %v1628 = vunpack.c.l.b16 %v426
    %v1629 = vunpack.c.h.b16 %v426
    %v1630 = vunpack.c.l.b16 %v427
    %v1631 = vunpack.c.l.b16 %v428
    %v1632 = vunpack.c.h.b16 %v428
    %v1633 = vunpack.c.l.b16 %v429
    %v1634 = vunpack.c.h.b16 %v429
    %v1635 = vunpack.c.l.b16 %v430
    %v1636 = vunpack.c.l.b16 %v431
    %v1637 = vunpack.c.h.b16 %v431
    %v1638 = vunpack.c.l.b16 %v432
    %v1639 = vunpack.c.h.b16 %v432
    %v1640 = vunpack.c.l.b16 %v433
    %v1641 = vunpack.c.l.b16 %v434
    %v1642 = vunpack.c.h.b16 %v434
    %v1643 = vunpack.c.l.b16 %v435
    %v1644 = vunpack.c.h.b16 %v435
    %v1645 = vunpack.c.l.b16 %v436
    %v1646 = vunpack.c.l.b16 %v437
    %v1647 = vunpack.c.h.b16 %v437
    %v1648 = vunpack.c.l.b16 %v438
    %v1649 = vunpack.c.h.b16 %v438
    %v1650 = vunpack.c.l.b16 %v439
    %v1651 = vunpack.c.l.b16 %v440
    %v1652 = vunpack.c.h.b16 %v440
    %v1653 = vunpack.c.l.b16 %v441
    %v1654 = vunpack.c.h.b16 %v441
    %v1655 = vunpack.c.l.b16 %v442
    %v1656 = vunpack.c.l.b16 %v443
    %v1657 = vunpack.c.h.b16 %v443
    %v1658 = vunpack.c.l.b16 %v444
    %v1659 = vunpack.c.h.b16 %v444
    %v1660 = vunpack.c.l.b16 %v445
    %v1661 = vunpack.c.l.b16 %v446
    %v1662 = vunpack.c.h.b16 %v446
    %v1663 = vunpack.c.l.b16 %v447
    %v1664 = vunpack.c.h.b16 %v447
    %v1665 = vunpack.c.l.b16 %v448
    %v1666 = vunpack.c.l.b16 %v449
    %v1667 = vunpack.c.h.b16 %v449
    %v1668 = vunpack.c.l.b16 %v450
    %v1669 = vunpack.c.h.b16 %v450
    %v1670 = vunpack.c.l.b16 %v451
    %v1671 = vunpack.c.l.b16 %v452
    %v1672 = vunpack.c.h.b16 %v452
    %v1673 = vunpack.c.l.b16 %v453
    %v1674 = vunpack.c.h.b16 %v453
    %v1675 = vunpack.c.l.b16 %v454
    %v1676 = vunpack.c.l.b16 %v455
    %v1677 = vunpack.c.h.b16 %v455
    %v1678 = vunpack.c.l.b16 %v456
    %v1679 = vunpack.c.h.b16 %v456
    %v1680 = vunpack.c.l.b16 %v457
    %v1681 = vunpack.c.l.b16 %v458
    %v1682 = vunpack.c.h.b16 %v458
    %v1683 = vunpack.c.l.b16 %v459
    %v1684 = vunpack.c.h.b16 %v459
    %v1685 = vunpack.c.l.b16 %v460
    %v1686 = vunpack.c.l.b16 %v461
    %v1687 = vunpack.c.h.b16 %v461
    %v1688 = vunpack.c.l.b16 %v462
    %v1689 = vunpack.c.h.b16 %v462
    %v1690 = vunpack.c.l.b16 %v463
    %v1691 = vunpack.c.l.b16 %v464
    %v1692 = vunpack.c.h.b16 %v464
    %v1693 = vunpack.c.l.b16 %v465
    %v1694 = vunpack.c.h.b16 %v465
    %v1695 = vunpack.c.l.b16 %v466
    %v1696 = vunpack.c.l.b16 %v467
    %v1697 = vunpack.c.h.b16 %v467
    %v1698 = vunpack.c.l.b16 %v468
    %v1699 = vunpack.c.h.b16 %v468
    %v1700 = vunpack.c.l.b16 %v469
    %v1701 = vunpack.c.l.b16 %v470
    %v1702 = vunpack.c.h.b16 %v470
    %v1703 = vunpack.c.l.b16 %v471
    %v1704 = vunpack.c.h.b16 %v471
    %v1705 = vunpack.c.l.b16 %v472
    %v1706 = vunpack.c.l.b16 %v473
    %v1707 = vunpack.c.h.b16 %v473
    %v1708 = vunpack.c.l.b16 %v474
    %v1709 = vunpack.c.h.b16 %v474
    %v1710 = vunpack.c.l.b16 %v475
    %v1711 = vunpack.c.l.b16 %v476
    %v1712 = vunpack.c.h.b16 %v476
    %v1713 = vunpack.c.l.b16 %v477
    %v1714 = vunpack.c.h.b16 %v477
    %v1715 = vunpack.c.l.b16 %v478
    %v1716 = vunpack.c.l.b16 %v479
    %v1717 = vunpack.c.h.b16 %v479
    %v1718 = vunpack.c.l.b16 %v480
    %v1719 = vunpack.c.h.b16 %v480
    %v1720 = vunpack.c.l.b16 %v481
    %v1721 = vunpack.c.l.b16 %v482
    %v1722 = vunpack.c.h.b16 %v482
    %v1723 = vunpack.c.l.b16 %v483
    %v1724 = vunpack.c.h.b16 %v483
    %v1725 = vunpack.c.l.b16 %v484
    %v1726 = vunpack.c.l.b16 %v485
    %v1727 = vunpack.c.h.b16 %v485
    %v1728 = vunpack.c.l.b16 %v486
    %v1729 = vunpack.c.h.b16 %v486
    %v1730 = vunpack.c.l.b16 %v487
    %v1731 = vunpack.c.l.b16 %v488
    %v1732 = vunpack.c.h.b16 %v488
    %v1733 = vunpack.c.l.b16 %v489
    %v1734 = vunpack.c.h.b16 %v489
    %v1735 = vunpack.c.l.b16 %v490
    %v1736 = vunpack.c.l.b16 %v491
    %v1737 = vunpack.c.h.b16 %v491
    %v1738 = vunpack.c.l.b16 %v492
    %v1739 = vunpack.c.h.b16 %v492
    %v1740 = vunpack.c.l.b16 %v493
    %v1741 = vunpack.c.l.b16 %v494
    %v1742 = vunpack.c.h.b16 %v494
    %v1743 = vunpack.c.l.b16 %v495
    %v1744 = vunpack.c.h.b16 %v495
    %v1745 = vunpack.c.l.b16 %v496
    %v1746 = vunpack.c.l.b16 %v497
    %v1747 = vunpack.c.h.b16 %v497
    %v1748 = vunpack.c.l.b16 %v498
    %v1749 = vunpack.c.h.b16 %v498
    %v1750 = vunpack.c.l.b16 %v499
    %v1751 = vunpack.c.l.b16 %v500
    %v1752 = vunpack.c.h.b16 %v500
    %v1753 = vunpack.c.l.b16 %v501
    %v1754 = vunpack.c.h.b16 %v501
    %v1755 = vunpack.c.l.b16 %v502
    %v1756 = vunpack.c.l.b16 %v503
    %v1757 = vunpack.c.h.b16 %v503
    %v1758 = vunpack.c.l.b16 %v504
    %v1759 = vunpack.c.h.b16 %v504
    %v1760 = vunpack.c.l.b16 %v505
    %v1761 = vunpack.c.l.b16 %v506
    %v1762 = vunpack.c.h.b16 %v506
    %v1763 = vunpack.c.l.b16 %v507
    %v1764 = vunpack.c.h.b16 %v507
    %v1765 = vunpack.c.l.b16 %v508
    %v1766 = vunpack.c.l.b16 %v509
    %v1767 = vunpack.c.h.b16 %v509
    %v1768 = vunpack.c.l.b16 %v510
    %v1769 = vunpack.c.h.b16 %v510
    %v1770 = vunpack.c.l.b16 %v511
    %v1771 = vunpack.c.l.b16 %v512
    %v1772 = vunpack.c.h.b16 %v512
    %v1773 = vunpack.c.l.b16 %v513
    %v1774 = vunpack.c.h.b16 %v513
    %v1775 = vunpack.c.l.b16 %v514
    %v1776 = vunpack.c.l.b16 %v515
    %v1777 = vunpack.c.h.b16 %v515
    %v1778 = vunpack.c.l.b16 %v516
    %v1779 = vunpack.c.h.b16 %v516
    %v1780 = vunpack.c.l.b16 %v517
    %v1781 = vunpack.c.l.b16 %v518
    %v1782 = vunpack.c.h.b16 %v518
    %v1783 = vunpack.c.l.b16 %v519
    %v1784 = vunpack.c.h.b16 %v519
    %v1785 = vunpack.c.l.b16 %v520
    %v1786 = vunpack.c.l.b16 %v521
    %v1787 = vunpack.c.h.b16 %v521
    %v1788 = vunpack.c.l.b16 %v522
    %v1789 = vunpack.c.h.b16 %v522
    %v1790 = vunpack.c.l.b16 %v523
    %v1791 = vunpack.c.l.b16 %v524
    %v1792 = vunpack.c.h.b16 %v524
    %v1793 = vunpack.c.l.b16 %v525
    %v1794 = vunpack.c.h.b16 %v525
    %v1795 = vunpack.c.l.b16 %v526
    %v1796 = vunpack.c.l.b16 %v527
    %v1797 = vunpack.c.h.b16 %v527
    %v1798 = vunpack.c.l.b16 %v528
    %v1799 = vunpack.c.h.b16 %v528
    %v1800 = vunpack.c.l.b16 %v529
    %v1801 = vunpack.c.l.b16 %v530
    %v1802 = vunpack.c.h.b16 %v530
    %v1803 = vunpack.c.l.b16 %v531
    %v1804 = vunpack.c.h.b16 %v531
    %v1805 = vunpack.c.l.b16 %v532
    %v1806 = vunpack.c.l.b16 %v533
    %v1807 = vunpack.c.h.b16 %v533
    %v1808 = vunpack.c.l.b16 %v534
    %v1809 = vunpack.c.h.b16 %v534
    %v1810 = vunpack.c.l.b16 %v535
    %v1811 = vunpack.c.l.b16 %v536
    %v1812 = vunpack.c.h.b16 %v536
    %v1813 = vunpack.c.l.b16 %v537
    %v1814 = vunpack.c.h.b16 %v537
    %v1815 = vunpack.c.l.b16 %v538
    %v1816 = vunpack.c.l.b16 %v539
    %v1817 = vunpack.c.h.b16 %v539
    %v1818 = vunpack.c.l.b16 %v540
    %v1819 = vunpack.c.h.b16 %v540
    %v1820 = vunpack.c.l.b16 %v541
    %v1821 = vunpack.c.l.b16 %v542
    %v1822 = vunpack.c.h.b16 %v542
    %v1823 = vunpack.c.l.b16 %v543
    %v1824 = vunpack.c.h.b16 %v543
    %v1825 = vunpack.c.l.b16 %v544
    %v1826 = vunpack.c.l.b16 %v545
    %v1827 = vunpack.c.h.b16 %v545
    %v1828 = vunpack.c.l.b16 %v546
    %v1829 = vunpack.c.h.b16 %v546
    %v1830 = vunpack.c.l.b16 %v547
    %v1831 = vunpack.c.l.b16 %v548
    %v1832 = vunpack.c.h.b16 %v548
    %v1833 = vunpack.c.l.b16 %v549
    %v1834 = vunpack.c.h.b16 %v549
    %v1835 = vunpack.c.l.b16 %v550
    %v1836 = vunpack.c.l.b16 %v551
    %v1837 = vunpack.c.h.b16 %v551
    %v1838 = vunpack.c.l.b16 %v552
    %v1839 = vunpack.c.h.b16 %v552
    %v1840 = vunpack.c.l.b16 %v553
    %v1841 = vunpack.c.l.b16 %v554
    %v1842 = vunpack.c.h.b16 %v554
    %v1843 = vunpack.c.l.b16 %v555
    %v1844 = vunpack.c.h.b16 %v555
    %v1845 = vunpack.c.l.b16 %v556
    %v1846 = vunpack.c.l.b16 %v557
    %v1847 = vunpack.c.h.b16 %v557
    %v1848 = vunpack.c.l.b16 %v558
    %v1849 = vunpack.c.h.b16 %v558
    %v1850 = vunpack.c.l.b16 %v559
    %v1851 = vunpack.c.l.b16 %v560
    %v1852 = vunpack.c.h.b16 %v560
    %v1853 = vunpack.c.l.b16 %v561
    %v1854 = vunpack.c.h.b16 %v561
    %v1855 = vunpack.c.l.b16 %v562
    %v1856 = vunpack.c.l.b16 %v563
    %v1857 = vunpack.c.h.b16 %v563
    %v1858 = vunpack.c.l.b16 %v564
    %v1859 = vunpack.c.h.b16 %v564
    %v1860 = vunpack.c.l.b16 %v565
    %v1861 = vunpack.c.l.b16 %v566
    %v1862 = vunpack.c.h.b16 %v566
    %v1863 = vunpack.c.l.b16 %v567
    %v1864 = vunpack.c.h.b16 %v567
    %v1865 = vunpack.c.l.b16 %v568
    %v1866 = vunpack.c.l.b16 %v569
    %v1867 = vunpack.c.h.b16 %v569
    %v1868 = vunpack.c.l.b16 %v570
    %v1869 = vunpack.c.h.b16 %v570
    %v1870 = vunpack.c.l.b16 %v571
    %v1871 = vunpack.c.l.b16 %v572
    %v1872 = vunpack.c.h.b16 %v572
    %v1873 = vunpack.c.l.b16 %v573
    %v1874 = vunpack.c.h.b16 %v573
    %v1875 = vunpack.c.l.b16 %v574
    %v1876 = vunpack.c.l.b16 %v575
    %v1877 = vunpack.c.h.b16 %v575
    %v1878 = vunpack.c.l.b16 %v576
    %v1879 = vunpack.c.h.b16 %v576
    %v1880 = vunpack.c.l.b16 %v577
    %v1881 = vunpack.c.l.b16 %v578
    %v1882 = vunpack.c.h.b16 %v578
    %v1883 = vunpack.c.l.b16 %v579
    %v1884 = vunpack.c.h.b16 %v579
    %v1885 = vunpack.c.l.b16 %v580
    %v1886 = vunpack.c.l.b16 %v581
    %v1887 = vunpack.c.h.b16 %v581
    %v1888 = vunpack.c.l.b16 %v582
    %v1889 = vunpack.c.h.b16 %v582
    %v1890 = vunpack.c.l.b16 %v583
    %v1891 = vpack.c.b16 %v1096, %v1091
    %v1892 = vpack.c.b16 %v1097, %v1092
    %v1893 = vpack.c.b16 %v1098, %v1093
    %v1894 = vpack.c.b16 %v1099, %v1094
    %v1895 = vpack.c.b16 %v1100, %v1095
    %v1896 = vpack.c.b16 %v1106, %v1101
    %v1897 = vpack.c.b16 %v1107, %v1102
    %v1898 = vpack.c.b16 %v1108, %v1103
    %v1899 = vpack.c.b16 %v1109, %v1104
    %v1900 = vpack.c.b16 %v1110, %v1105
    %v1901 = vpack.c.b16 %v1116, %v1111
    %v1902 = vpack.c.b16 %v1117, %v1112
    %v1903 = vpack.c.b16 %v1118, %v1113
    %v1904 = vpack.c.b16 %v1119, %v1114
    %v1905 = vpack.c.b16 %v1120, %v1115
    %v1906 = vpack.c.b16 %v1126, %v1121
    %v1907 = vpack.c.b16 %v1127, %v1122
    %v1908 = vpack.c.b16 %v1128, %v1123
    %v1909 = vpack.c.b16 %v1129, %v1124
    %v1910 = vpack.c.b16 %v1130, %v1125
    %v1911 = vpack.c.b16 %v1136, %v1131
    %v1912 = vpack.c.b16 %v1137, %v1132
    %v1913 = vpack.c.b16 %v1138, %v1133
    %v1914 = vpack.c.b16 %v1139, %v1134
    %v1915 = vpack.c.b16 %v1140, %v1135
    %v1916 = vpack.c.b16 %v1146, %v1141
    %v1917 = vpack.c.b16 %v1147, %v1142
    %v1918 = vpack.c.b16 %v1148, %v1143
    %v1919 = vpack.c.b16 %v1149, %v1144
    %v1920 = vpack.c.b16 %v1150, %v1145
    %v1921 = vpack.c.b16 %v1156, %v1151
    %v1922 = vpack.c.b16 %v1157, %v1152
    %v1923 = vpack.c.b16 %v1158, %v1153
    %v1924 = vpack.c.b16 %v1159, %v1154
    %v1925 = vpack.c.b16 %v1160, %v1155
    %v1926 = vpack.c.b16 %v1166, %v1161
    %v1927 = vpack.c.b16 %v1167, %v1162
    %v1928 = vpack.c.b16 %v1168, %v1163
    %v1929 = vpack.c.b16 %v1169, %v1164
    %v1930 = vpack.c.b16 %v1170, %v1165
    %v1931 = vpack.c.b16 %v1176, %v1171
    %v1932 = vpack.c.b16 %v1177, %v1172
    %v1933 = vpack.c.b16 %v1178, %v1173
    %v1934 = vpack.c.b16 %v1179, %v1174
    %v1935 = vpack.c.b16 %v1180, %v1175
    %v1936 = vpack.c.b16 %v1186, %v1181
    %v1937 = vpack.c.b16 %v1187, %v1182
    %v1938 = vpack.c.b16 %v1188, %v1183
    %v1939 = vpack.c.b16 %v1189, %v1184
    %v1940 = vpack.c.b16 %v1190, %v1185
    %v1941 = vpack.c.b16 %v1196, %v1191
    %v1942 = vpack.c.b16 %v1197, %v1192
    %v1943 = vpack.c.b16 %v1198, %v1193
    %v1944 = vpack.c.b16 %v1199, %v1194
    %v1945 = vpack.c.b16 %v1200, %v1195
    %v1946 = vpack.c.b16 %v1206, %v1201
    %v1947 = vpack.c.b16 %v1207, %v1202
    %v1948 = vpack.c.b16 %v1208, %v1203
    %v1949 = vpack.c.b16 %v1209, %v1204
    %v1950 = vpack.c.b16 %v1210, %v1205
    %v1951 = vpack.c.b16 %v1216, %v1211
    %v1952 = vpack.c.b16 %v1217, %v1212
    %v1953 = vpack.c.b16 %v1218, %v1213
    %v1954 = vpack.c.b16 %v1219, %v1214
    %v1955 = vpack.c.b16 %v1220, %v1215
    %v1956 = vpack.c.b16 %v1226, %v1221
    %v1957 = vpack.c.b16 %v1227, %v1222
    %v1958 = vpack.c.b16 %v1228, %v1223
    %v1959 = vpack.c.b16 %v1229, %v1224
    %v1960 = vpack.c.b16 %v1230, %v1225
    %v1961 = vpack.c.b16 %v1236, %v1231
    %v1962 = vpack.c.b16 %v1237, %v1232
    %v1963 = vpack.c.b16 %v1238, %v1233
    %v1964 = vpack.c.b16 %v1239, %v1234
    %v1965 = vpack.c.b16 %v1240, %v1235
    %v1966 = vpack.c.b16 %v1246, %v1241
    %v1967 = vpack.c.b16 %v1247, %v1242
    %v1968 = vpack.c.b16 %v1248, %v1243
    %v1969 = vpack.c.b16 %v1249, %v1244
    %v1970 = vpack.c.b16 %v1250, %v1245
    %v1971 = vpack.c.b16 %v1256, %v1251
    %v1972 = vpack.c.b16 %v1257, %v1252
    %v1973 = vpack.c.b16 %v1258, %v1253
    %v1974 = vpack.c.b16 %v1259, %v1254
    %v1975 = vpack.c.b16 %v1260, %v1255
    %v1976 = vpack.c.b16 %v1266, %v1261
    %v1977 = vpack.c.b16 %v1267, %v1262
    %v1978 = vpack.c.b16 %v1268, %v1263
    %v1979 = vpack.c.b16 %v1269, %v1264
    %v1980 = vpack.c.b16 %v1270, %v1265
    %v1981 = vpack.c.b16 %v1276, %v1271
    %v1982 = vpack.c.b16 %v1277, %v1272
    %v1983 = vpack.c.b16 %v1278, %v1273
    %v1984 = vpack.c.b16 %v1279, %v1274
    %v1985 = vpack.c.b16 %v1280, %v1275
    %v1986 = vpack.c.b16 %v1286, %v1281
    %v1987 = vpack.c.b16 %v1287, %v1282
    %v1988 = vpack.c.b16 %v1288, %v1283
    %v1989 = vpack.c.b16 %v1289, %v1284
    %v1990 = vpack.c.b16 %v1290, %v1285
    %v1991 = vpack.c.b16 %v1296, %v1291
    %v1992 = vpack.c.b16 %v1297, %v1292
    %v1993 = vpack.c.b16 %v1298, %v1293
    %v1994 = vpack.c.b16 %v1299, %v1294
    %v1995 = vpack.c.b16 %v1300, %v1295
    %v1996 = vpack.c.b16 %v1306, %v1301
    %v1997 = vpack.c.b16 %v1307, %v1302
    %v1998 = vpack.c.b16 %v1308, %v1303
    %v1999 = vpack.c.b16 %v1309, %v1304
    %v2000 = vpack.c.b16 %v1310, %v1305
    %v2001 = vpack.c.b16 %v1316, %v1311
    %v2002 = vpack.c.b16 %v1317, %v1312
    %v2003 = vpack.c.b16 %v1318, %v1313
    %v2004 = vpack.c.b16 %v1319, %v1314
    %v2005 = vpack.c.b16 %v1320, %v1315
    %v2006 = vpack.c.b16 %v1326, %v1321
    %v2007 = vpack.c.b16 %v1327, %v1322
    %v2008 = vpack.c.b16 %v1328, %v1323
    %v2009 = vpack.c.b16 %v1329, %v1324
    %v2010 = vpack.c.b16 %v1330, %v1325
    %v2011 = vpack.c.b16 %v1336, %v1331
    %v2012 = vpack.c.b16 %v1337, %v1332
    %v2013 = vpack.c.b16 %v1338, %v1333
    %v2014 = vpack.c.b16 %v1339, %v1334
    %v2015 = vpack.c.b16 %v1340, %v1335
    %v2016 = vpack.c.b16 %v1346, %v1341
    %v2017 = vpack.c.b16 %v1347, %v1342
    %v2018 = vpack.c.b16 %v1348, %v1343
    %v2019 = vpack.c.b16 %v1349, %v1344
    %v2020 = vpack.c.b16 %v1350, %v1345
    %v2021 = vpack.c.b16 %v1356, %v1351
    %v2022 = vpack.c.b16 %v1357, %v1352
    %v2023 = vpack.c.b16 %v1358, %v1353
    %v2024 = vpack.c.b16 %v1359, %v1354
    %v2025 = vpack.c.b16 %v1360, %v1355
    %v2026 = vpack.c.b16 %v1366, %v1361
    %v2027 = vpack.c.b16 %v1367, %v1362
    %v2028 = vpack.c.b16 %v1368, %v1363
    %v2029 = vpack.c.b16 %v1369, %v1364
    %v2030 = vpack.c.b16 %v1370, %v1365
    %v2031 = vpack.c.b16 %v1376, %v1371
    %v2032 = vpack.c.b16 %v1377, %v1372
    %v2033 = vpack.c.b16 %v1378, %v1373
    %v2034 = vpack.c.b16 %v1379, %v1374
    %v2035 = vpack.c.b16 %v1380, %v1375
    %v2036 = vpack.c.b16 %v1386, %v1381
    %v2037 = vpack.c.b16 %v1387, %v1382
    %v2038 = vpack.c.b16 %v1388, %v1383
    %v2039 = vpack.c.b16 %v1389, %v1384
    %v2040 = vpack.c.b16 %v1390, %v1385
    %v2041 = vpack.c.b16 %v1396, %v1391
    %v2042 = vpack.c.b16 %v1397, %v1392
    %v2043 = vpack.c.b16 %v1398, %v1393
    %v2044 = vpack.c.b16 %v1399, %v1394
    %v2045 = vpack.c.b16 %v1400, %v1395
    %v2046 = vpack.c.b16 %v1406, %v1401
    %v2047 = vpack.c.b16 %v1407, %v1402
    %v2048 = vpack.c.b16 %v1408, %v1403
    %v2049 = vpack.c.b16 %v1409, %v1404
    %v2050 = vpack.c.b16 %v1410, %v1405
    %v2051 = vpack.c.b16 %v1416, %v1411
    %v2052 = vpack.c.b16 %v1417, %v1412
    %v2053 = vpack.c.b16 %v1418, %v1413
    %v2054 = vpack.c.b16 %v1419, %v1414
    %v2055 = vpack.c.b16 %v1420, %v1415
    %v2056 = vpack.c.b16 %v1426, %v1421
    %v2057 = vpack.c.b16 %v1427, %v1422
    %v2058 = vpack.c.b16 %v1428, %v1423
    %v2059 = vpack.c.b16 %v1429, %v1424
    %v2060 = vpack.c.b16 %v1430, %v1425
    %v2061 = vpack.c.b16 %v1436, %v1431
    %v2062 = vpack.c.b16 %v1437, %v1432
    %v2063 = vpack.c.b16 %v1438, %v1433
    %v2064 = vpack.c.b16 %v1439, %v1434
    %v2065 = vpack.c.b16 %v1440, %v1435
    %v2066 = vpack.c.b16 %v1446, %v1441
    %v2067 = vpack.c.b16 %v1447, %v1442
    %v2068 = vpack.c.b16 %v1448, %v1443
    %v2069 = vpack.c.b16 %v1449, %v1444
    %v2070 = vpack.c.b16 %v1450, %v1445
    %v2071 = vpack.c.b16 %v1456, %v1451
    %v2072 = vpack.c.b16 %v1457, %v1452
    %v2073 = vpack.c.b16 %v1458, %v1453
    %v2074 = vpack.c.b16 %v1459, %v1454
    %v2075 = vpack.c.b16 %v1460, %v1455
    %v2076 = vpack.c.b16 %v1466, %v1461
    %v2077 = vpack.c.b16 %v1467, %v1462
    %v2078 = vpack.c.b16 %v1468, %v1463
    %v2079 = vpack.c.b16 %v1469, %v1464
    %v2080 = vpack.c.b16 %v1470, %v1465
    %v2081 = vpack.c.b16 %v1476, %v1471
    %v2082 = vpack.c.b16 %v1477, %v1472
    %v2083 = vpack.c.b16 %v1478, %v1473
    %v2084 = vpack.c.b16 %v1479, %v1474
    %v2085 = vpack.c.b16 %v1480, %v1475
    %v2086 = vpack.c.b16 %v1486, %v1481
    %v2087 = vpack.c.b16 %v1487, %v1482
    %v2088 = vpack.c.b16 %v1488, %v1483
    %v2089 = vpack.c.b16 %v1489, %v1484
    %v2090 = vpack.c.b16 %v1490, %v1485
    %v2091 = vpack.c.b16 %v1496, %v1491
    %v2092 = vpack.c.b16 %v1497, %v1492
    %v2093 = vpack.c.b16 %v1498, %v1493
    %v2094 = vpack.c.b16 %v1499, %v1494
    %v2095 = vpack.c.b16 %v1500, %v1495
    %v2096 = vpack.c.b16 %v1506, %v1501
    %v2097 = vpack.c.b16 %v1507, %v1502
    %v2098 = vpack.c.b16 %v1508, %v1503
    %v2099 = vpack.c.b16 %v1509, %v1504
    %v2100 = vpack.c.b16 %v1510, %v1505
    %v2101 = vpack.c.b16 %v1516, %v1511
    %v2102 = vpack.c.b16 %v1517, %v1512
    %v2103 = vpack.c.b16 %v1518, %v1513
    %v2104 = vpack.c.b16 %v1519, %v1514
    %v2105 = vpack.c.b16 %v1520, %v1515
    %v2106 = vpack.c.b16 %v1526, %v1521
    %v2107 = vpack.c.b16 %v1527, %v1522
    %v2108 = vpack.c.b16 %v1528, %v1523
    %v2109 = vpack.c.b16 %v1529, %v1524
    %v2110 = vpack.c.b16 %v1530, %v1525
    %v2111 = vpack.c.b16 %v1536, %v1531
    %v2112 = vpack.c.b16 %v1537, %v1532
    %v2113 = vpack.c.b16 %v1538, %v1533
    %v2114 = vpack.c.b16 %v1539, %v1534
    %v2115 = vpack.c.b16 %v1540, %v1535
    %v2116 = vpack.c.b16 %v1546, %v1541
    %v2117 = vpack.c.b16 %v1547, %v1542
    %v2118 = vpack.c.b16 %v1548, %v1543
    %v2119 = vpack.c.b16 %v1549, %v1544
    %v2120 = vpack.c.b16 %v1550, %v1545
    %v2121 = vpack.c.b16 %v1556, %v1551
    %v2122 = vpack.c.b16 %v1557, %v1552
    %v2123 = vpack.c.b16 %v1558, %v1553
    %v2124 = vpack.c.b16 %v1559, %v1554
    %v2125 = vpack.c.b16 %v1560, %v1555
    %v2126 = vpack.c.b16 %v1566, %v1561
    %v2127 = vpack.c.b16 %v1567, %v1562
    %v2128 = vpack.c.b16 %v1568, %v1563
    %v2129 = vpack.c.b16 %v1569, %v1564
    %v2130 = vpack.c.b16 %v1570, %v1565
    %v2131 = vpack.c.b16 %v1576, %v1571
    %v2132 = vpack.c.b16 %v1577, %v1572
    %v2133 = vpack.c.b16 %v1578, %v1573
    %v2134 = vpack.c.b16 %v1579, %v1574
    %v2135 = vpack.c.b16 %v1580, %v1575
    %v2136 = vpack.c.b16 %v1586, %v1581
    %v2137 = vpack.c.b16 %v1587, %v1582
    %v2138 = vpack.c.b16 %v1588, %v1583
    %v2139 = vpack.c.b16 %v1589, %v1584
    %v2140 = vpack.c.b16 %v1590, %v1585
    %v2141 = vpack.c.b16 %v1596, %v1591
    %v2142 = vpack.c.b16 %v1597, %v1592
    %v2143 = vpack.c.b16 %v1598, %v1593
    %v2144 = vpack.c.b16 %v1599, %v1594
    %v2145 = vpack.c.b16 %v1600, %v1595
    %v2146 = vpack.c.b16 %v1606, %v1601
    %v2147 = vpack.c.b16 %v1607, %v1602
    %v2148 = vpack.c.b16 %v1608, %v1603
    %v2149 = vpack.c.b16 %v1609, %v1604
    %v2150 = vpack.c.b16 %v1610, %v1605
    %v2151 = vpack.c.b16 %v1616, %v1611
    %v2152 = vpack.c.b16 %v1617, %v1612
    %v2153 = vpack.c.b16 %v1618, %v1613
    %v2154 = vpack.c.b16 %v1619, %v1614
    %v2155 = vpack.c.b16 %v1620, %v1615
    %v2156 = vpack.c.b16 %v1626, %v1621
    %v2157 = vpack.c.b16 %v1627, %v1622
    %v2158 = vpack.c.b16 %v1628, %v1623
    %v2159 = vpack.c.b16 %v1629, %v1624
    %v2160 = vpack.c.b16 %v1630, %v1625
    %v2161 = vpack.c.b16 %v1636, %v1631
    %v2162 = vpack.c.b16 %v1637, %v1632
    %v2163 = vpack.c.b16 %v1638, %v1633
    %v2164 = vpack.c.b16 %v1639, %v1634
    %v2165 = vpack.c.b16 %v1640, %v1635
    %v2166 = vpack.c.b16 %v1646, %v1641
    %v2167 = vpack.c.b16 %v1647, %v1642
    %v2168 = vpack.c.b16 %v1648, %v1643
    %v2169 = vpack.c.b16 %v1649, %v1644
    %v2170 = vpack.c.b16 %v1650, %v1645
    %v2171 = vpack.c.b16 %v1656, %v1651
    %v2172 = vpack.c.b16 %v1657, %v1652
    %v2173 = vpack.c.b16 %v1658, %v1653
    %v2174 = vpack.c.b16 %v1659, %v1654
    %v2175 = vpack.c.b16 %v1660, %v1655
    %v2176 = vpack.c.b16 %v1666, %v1661
    %v2177 = vpack.c.b16 %v1667, %v1662
    %v2178 = vpack.c.b16 %v1668, %v1663
    %v2179 = vpack.c.b16 %v1669, %v1664
    %v2180 = vpack.c.b16 %v1670, %v1665
    %v2181 = vpack.c.b16 %v1676, %v1671
    %v2182 = vpack.c.b16 %v1677, %v1672
    %v2183 = vpack.c.b16 %v1678, %v1673
    %v2184 = vpack.c.b16 %v1679, %v1674
    %v2185 = vpack.c.b16 %v1680, %v1675
    %v2186 = vpack.c.b16 %v1686, %v1681
    %v2187 = vpack.c.b16 %v1687, %v1682
    %v2188 = vpack.c.b16 %v1688, %v1683
    %v2189 = vpack.c.b16 %v1689, %v1684
    %v2190 = vpack.c.b16 %v1690, %v1685
    %v2191 = vpack.c.b16 %v1696, %v1691
    %v2192 = vpack.c.b16 %v1697, %v1692
    %v2193 = vpack.c.b16 %v1698, %v1693
    %v2194 = vpack.c.b16 %v1699, %v1694
    %v2195 = vpack.c.b16 %v1700, %v1695
    %v2196 = vpack.c.b16 %v1706, %v1701
    %v2197 = vpack.c.b16 %v1707, %v1702
    %v2198 = vpack.c.b16 %v1708, %v1703
    %v2199 = vpack.c.b16 %v1709, %v1704
    %v2200 = vpack.c.b16 %v1710, %v1705
    %v2201 = vpack.c.b16 %v1716, %v1711
    %v2202 = vpack.c.b16 %v1717, %v1712
    %v2203 = vpack.c.b16 %v1718, %v1713
    %v2204 = vpack.c.b16 %v1719, %v1714
    %v2205 = vpack.c.b16 %v1720, %v1715
    %v2206 = vpack.c.b16 %v1726, %v1721
    %v2207 = vpack.c.b16 %v1727, %v1722
    %v2208 = vpack.c.b16 %v1728, %v1723
    %v2209 = vpack.c.b16 %v1729, %v1724
    %v2210 = vpack.c.b16 %v1730, %v1725
    %v2211 = vpack.c.b16 %v1736, %v1731
    %v2212 = vpack.c.b16 %v1737, %v1732
    %v2213 = vpack.c.b16 %v1738, %v1733
    %v2214 = vpack.c.b16 %v1739, %v1734
    %v2215 = vpack.c.b16 %v1740, %v1735
    %v2216 = vpack.c.b16 %v1746, %v1741
    %v2217 = vpack.c.b16 %v1747, %v1742
    %v2218 = vpack.c.b16 %v1748, %v1743
    %v2219 = vpack.c.b16 %v1749, %v1744
    %v2220 = vpack.c.b16 %v1750, %v1745
    %v2221 = vpack.c.b16 %v1756, %v1751
    %v2222 = vpack.c.b16 %v1757, %v1752
    %v2223 = vpack.c.b16 %v1758, %v1753
    %v2224 = vpack.c.b16 %v1759, %v1754
    %v2225 = vpack.c.b16 %v1760, %v1755
    %v2226 = vpack.c.b16 %v1766, %v1761
    %v2227 = vpack.c.b16 %v1767, %v1762
    %v2228 = vpack.c.b16 %v1768, %v1763
    %v2229 = vpack.c.b16 %v1769, %v1764
    %v2230 = vpack.c.b16 %v1770, %v1765
    %v2231 = vpack.c.b16 %v1776, %v1771
    %v2232 = vpack.c.b16 %v1777, %v1772
    %v2233 = vpack.c.b16 %v1778, %v1773
    %v2234 = vpack.c.b16 %v1779, %v1774
    %v2235 = vpack.c.b16 %v1780, %v1775
    %v2236 = vpack.c.b16 %v1786, %v1781
    %v2237 = vpack.c.b16 %v1787, %v1782
    %v2238 = vpack.c.b16 %v1788, %v1783
    %v2239 = vpack.c.b16 %v1789, %v1784
    %v2240 = vpack.c.b16 %v1790, %v1785
    %v2241 = vpack.c.b16 %v1796, %v1791
    %v2242 = vpack.c.b16 %v1797, %v1792
    %v2243 = vpack.c.b16 %v1798, %v1793
    %v2244 = vpack.c.b16 %v1799, %v1794
    %v2245 = vpack.c.b16 %v1800, %v1795
    %v2246 = vpack.c.b16 %v1806, %v1801
    %v2247 = vpack.c.b16 %v1807, %v1802
    %v2248 = vpack.c.b16 %v1808, %v1803
    %v2249 = vpack.c.b16 %v1809, %v1804
    %v2250 = vpack.c.b16 %v1810, %v1805
    %v2251 = vpack.c.b16 %v1816, %v1811
    %v2252 = vpack.c.b16 %v1817, %v1812
    %v2253 = vpack.c.b16 %v1818, %v1813
    %v2254 = vpack.c.b16 %v1819, %v1814
    %v2255 = vpack.c.b16 %v1820, %v1815
    %v2256 = vpack.c.b16 %v1826, %v1821
    %v2257 = vpack.c.b16 %v1827, %v1822
    %v2258 = vpack.c.b16 %v1828, %v1823
    %v2259 = vpack.c.b16 %v1829, %v1824
    %v2260 = vpack.c.b16 %v1830, %v1825
    %v2261 = vpack.c.b16 %v1836, %v1831
    %v2262 = vpack.c.b16 %v1837, %v1832
    %v2263 = vpack.c.b16 %v1838, %v1833
    %v2264 = vpack.c.b16 %v1839, %v1834
    %v2265 = vpack.c.b16 %v1840, %v1835
    %v2266 = vpack.c.b16 %v1846, %v1841
    %v2267 = vpack.c.b16 %v1847, %v1842
    %v2268 = vpack.c.b16 %v1848, %v1843
    %v2269 = vpack.c.b16 %v1849, %v1844
    %v2270 = vpack.c.b16 %v1850, %v1845
    %v2271 = vpack.c.b16 %v1856, %v1851
    %v2272 = vpack.c.b16 %v1857, %v1852
    %v2273 = vpack.c.b16 %v1858, %v1853
    %v2274 = vpack.c.b16 %v1859, %v1854
    %v2275 = vpack.c.b16 %v1860, %v1855
    %v2276 = vpack.c.b16 %v1866, %v1861
    %v2277 = vpack.c.b16 %v1867, %v1862
    %v2278 = vpack.c.b16 %v1868, %v1863
    %v2279 = vpack.c.b16 %v1869, %v1864
    %v2280 = vpack.c.b16 %v1870, %v1865
    %v2281 = vpack.c.b16 %v1876, %v1871
    %v2282 = vpack.c.b16 %v1877, %v1872
    %v2283 = vpack.c.b16 %v1878, %v1873
    %v2284 = vpack.c.b16 %v1879, %v1874
    %v2285 = vpack.c.b16 %v1880, %v1875
    %v2286 = vpack.c.b16 %v1886, %v1881
    %v2287 = vpack.c.b16 %v1887, %v1882
    %v2288 = vpack.c.b16 %v1888, %v1883
    %v2289 = vpack.c.b16 %v1889, %v1884
    %v2290 = vpack.c.b16 %v1890, %v1885
    %2691 = vmatprep.subr.bf16.mxu0 %v1892
    %2692 = vmatpush1.bf16.msra.mxu0 %v1891
    %2693 = vmatprep.subr.bf16.mxu0 %v1897
    %2694 = vmatpush1.bf16.msra.mxu0 %v1896
    %2695 = vmatprep.subr.bf16.mxu0 %v1902
    %2696 = vmatpush1.bf16.msra.mxu0 %v1901
    %2697 = vmatprep.subr.bf16.mxu0 %v1907
    %2698 = vmatpush1.bf16.msra.mxu0 %v1906
    %2699 = vmatprep.subr.bf16.mxu0 %v1912
    %2700 = vmatpush1.bf16.msra.mxu0 %v1911
    %2701 = vmatprep.subr.bf16.mxu0 %v1917
    %2702 = vmatpush1.bf16.msra.mxu0 %v1916
    %2703 = vmatprep.subr.bf16.mxu0 %v1922
    %2704 = vmatpush1.bf16.msra.mxu0 %v1921
    %2705 = vmatprep.subr.bf16.mxu0 %v1927
    %2706 = vmatpush1.bf16.msra.mxu0 %v1926
    %2707 = vmatprep.subr.bf16.mxu0 %v1932
    %2708 = vmatpush1.bf16.msra.mxu0 %v1931
    %2709 = vmatprep.subr.bf16.mxu0 %v1937
    %2710 = vmatpush1.bf16.msra.mxu0 %v1936
    %2711 = vmatprep.subr.bf16.mxu0 %v1942
    %2712 = vmatpush1.bf16.msra.mxu0 %v1941
    %2713 = vmatprep.subr.bf16.mxu0 %v1947
    %2714 = vmatpush1.bf16.msra.mxu0 %v1946
    %2715 = vmatprep.subr.bf16.mxu0 %v1952
    %2716 = vmatpush1.bf16.msra.mxu0 %v1951
    %2717 = vmatprep.subr.bf16.mxu0 %v1957
    %2718 = vmatpush1.bf16.msra.mxu0 %v1956
    %2719 = vmatprep.subr.bf16.mxu0 %v1962
    %2720 = vmatpush1.bf16.msra.mxu0 %v1961
    %2721 = vmatprep.subr.bf16.mxu0 %v1967
    %2722 = vmatpush1.bf16.msra.mxu0 %v1966
    %2723 = vmatprep.mubr.bf16.mxu0 %v95
    %2724 = vmatmul.mubr.bf16.gmra.mrb[0].mxu0 %v94
    %v2725 = vpop.f32.mrb[0].mxu0
    %v2726 = vadd.f32 %v589, %v2725
    %v2727 = vpop.f32.mrb[0].mxu0
    %v2728 = vadd.f32 %v593, %v2727
    %v2729 = vpop.f32.mrb[0].mxu0
    %v2730 = vpop.f32.mrb[0].mxu0
    %2731 = vdwg.mxu0
    %2732 = vmatprep.subr.bf16.mxu0 %v1972
    %2733 = vmatpush1.bf16.msra.mxu0 %v1971
    %2734 = vmatprep.subr.bf16.mxu0 %v1977
    %2735 = vmatpush1.bf16.msra.mxu0 %v1976
    %2736 = vmatprep.subr.bf16.mxu0 %v1982
    %2737 = vmatpush1.bf16.msra.mxu0 %v1981
    %2738 = vmatprep.subr.bf16.mxu0 %v1987
    %2739 = vmatpush1.bf16.msra.mxu0 %v1986
    %2740 = vmatprep.subr.bf16.mxu0 %v1992
    %2741 = vmatpush1.bf16.msra.mxu0 %v1991
    %2742 = vmatprep.subr.bf16.mxu0 %v1997
    %2743 = vmatpush1.bf16.msra.mxu0 %v1996
    %2744 = vmatprep.subr.bf16.mxu0 %v2002
    %2745 = vmatpush1.bf16.msra.mxu0 %v2001
    %2746 = vmatprep.subr.bf16.mxu0 %v2007
    %2747 = vmatpush1.bf16.msra.mxu0 %v2006
    %2748 = vmatprep.subr.bf16.mxu0 %v2012
    %2749 = vmatpush1.bf16.msra.mxu0 %v2011
    %2750 = vmatprep.subr.bf16.mxu0 %v2017
    %2751 = vmatpush1.bf16.msra.mxu0 %v2016
    %2752 = vmatprep.subr.bf16.mxu0 %v2022
    %2753 = vmatpush1.bf16.msra.mxu0 %v2021
    %2754 = vmatprep.subr.bf16.mxu0 %v2027
    %2755 = vmatpush1.bf16.msra.mxu0 %v2026
    %2756 = vmatprep.subr.bf16.mxu0 %v2032
    %2757 = vmatpush1.bf16.msra.mxu0 %v2031
    %2758 = vmatprep.subr.bf16.mxu0 %v2037
    %2759 = vmatpush1.bf16.msra.mxu0 %v2036
    %2760 = vmatprep.subr.bf16.mxu0 %v2042
    %2761 = vmatpush1.bf16.msra.mxu0 %v2041
    %2762 = vmatprep.subr.bf16.mxu0 %v2047
    %2763 = vmatpush1.bf16.msra.mxu0 %v2046
    %2764 = vmatprep.mubr.bf16.mxu0 %v97
    %2765 = vmatmul.mubr.bf16.gmra.mrb[0].mxu0 %v96
    %v2766 = vpop.f32.mrb[0].mxu0
    %v2767 = vadd.f32 %v2726, %v2766
    %v2768 = vpop.f32.mrb[0].mxu0
    %v2769 = vadd.f32 %v2728, %v2768
    %v2770 = vpop.f32.mrb[0].mxu0
    %v2771 = vpop.f32.mrb[0].mxu0
    %2772 = vdwg.mxu0
    %2773 = vmatprep.subr.bf16.mxu0 %v2052
    %2774 = vmatpush1.bf16.msra.mxu0 %v2051
    %2775 = vmatprep.subr.bf16.mxu0 %v2057
    %2776 = vmatpush1.bf16.msra.mxu0 %v2056
    %2777 = vmatprep.subr.bf16.mxu0 %v2062
    %2778 = vmatpush1.bf16.msra.mxu0 %v2061
    %2779 = vmatprep.subr.bf16.mxu0 %v2067
    %2780 = vmatpush1.bf16.msra.mxu0 %v2066
    %2781 = vmatprep.subr.bf16.mxu0 %v2072
    %2782 = vmatpush1.bf16.msra.mxu0 %v2071
    %2783 = vmatprep.subr.bf16.mxu0 %v2077
    %2784 = vmatpush1.bf16.msra.mxu0 %v2076
    %2785 = vmatprep.subr.bf16.mxu0 %v2082
    %2786 = vmatpush1.bf16.msra.mxu0 %v2081
    %2787 = vmatprep.subr.bf16.mxu0 %v2087
    %2788 = vmatpush1.bf16.msra.mxu0 %v2086
    %2789 = vmatprep.subr.bf16.mxu0 %v2092
    %2790 = vmatpush1.bf16.msra.mxu0 %v2091
    %2791 = vmatprep.subr.bf16.mxu0 %v2097
    %2792 = vmatpush1.bf16.msra.mxu0 %v2096
    %2793 = vmatprep.subr.bf16.mxu0 %v2102
    %2794 = vmatpush1.bf16.msra.mxu0 %v2101
    %2795 = vmatprep.subr.bf16.mxu0 %v2107
    %2796 = vmatpush1.bf16.msra.mxu0 %v2106
    %2797 = vmatprep.subr.bf16.mxu0 %v2112
    %2798 = vmatpush1.bf16.msra.mxu0 %v2111
    %2799 = vmatprep.subr.bf16.mxu0 %v2117
    %2800 = vmatpush1.bf16.msra.mxu0 %v2116
    %2801 = vmatprep.subr.bf16.mxu0 %v2122
    %2802 = vmatpush1.bf16.msra.mxu0 %v2121
    %2803 = vmatprep.subr.bf16.mxu0 %v2127
    %2804 = vmatpush1.bf16.msra.mxu0 %v2126
    %2805 = vmatprep.mubr.bf16.mxu0 %v99
    %2806 = vmatmul.mubr.bf16.gmra.mrb[0].mxu0 %v98
    %v2807 = vpop.f32.mrb[0].mxu0
    %v2808 = vadd.f32 %v2767, %v2807
    %v2809 = vpop.f32.mrb[0].mxu0
    %v2810 = vadd.f32 %v2769, %v2809
    %v2811 = vpop.f32.mrb[0].mxu0
    %v2812 = vpop.f32.mrb[0].mxu0
    %2813 = vdwg.mxu0
    %2814 = vmatprep.subr.bf16.mxu0 %v2132
    %2815 = vmatpush1.bf16.msra.mxu0 %v2131
    %2816 = vmatprep.subr.bf16.mxu0 %v2137
    %2817 = vmatpush1.bf16.msra.mxu0 %v2136
    %2818 = vmatprep.subr.bf16.mxu0 %v2142
    %2819 = vmatpush1.bf16.msra.mxu0 %v2141
    %2820 = vmatprep.subr.bf16.mxu0 %v2147
    %2821 = vmatpush1.bf16.msra.mxu0 %v2146
    %2822 = vmatprep.subr.bf16.mxu0 %v2152
    %2823 = vmatpush1.bf16.msra.mxu0 %v2151
    %2824 = vmatprep.subr.bf16.mxu0 %v2157
    %2825 = vmatpush1.bf16.msra.mxu0 %v2156
    %2826 = vmatprep.subr.bf16.mxu0 %v2162
    %2827 = vmatpush1.bf16.msra.mxu0 %v2161
    %2828 = vmatprep.subr.bf16.mxu0 %v2167
    %2829 = vmatpush1.bf16.msra.mxu0 %v2166
    %2830 = vmatprep.subr.bf16.mxu0 %v2172
    %2831 = vmatpush1.bf16.msra.mxu0 %v2171
    %2832 = vmatprep.subr.bf16.mxu0 %v2177
    %2833 = vmatpush1.bf16.msra.mxu0 %v2176
    %2834 = vmatprep.subr.bf16.mxu0 %v2182
    %2835 = vmatpush1.bf16.msra.mxu0 %v2181
    %2836 = vmatprep.subr.bf16.mxu0 %v2187
    %2837 = vmatpush1.bf16.msra.mxu0 %v2186
    %2838 = vmatprep.subr.bf16.mxu0 %v2192
    %2839 = vmatpush1.bf16.msra.mxu0 %v2191
    %2840 = vmatprep.subr.bf16.mxu0 %v2197
    %2841 = vmatpush1.bf16.msra.mxu0 %v2196
    %2842 = vmatprep.subr.bf16.mxu0 %v2202
    %2843 = vmatpush1.bf16.msra.mxu0 %v2201
    %2844 = vmatprep.subr.bf16.mxu0 %v2207
    %2845 = vmatpush1.bf16.msra.mxu0 %v2206
    %2846 = vmatprep.mubr.bf16.mxu0 %v101
    %2847 = vmatmul.mubr.bf16.gmra.mrb[0].mxu0 %v100
    %v2848 = vpop.f32.mrb[0].mxu0
    %v2849 = vadd.f32 %v2808, %v2848
    %v2850 = vpop.f32.mrb[0].mxu0
    %v2851 = vadd.f32 %v2810, %v2850
    %v2852 = vpop.f32.mrb[0].mxu0
    %v2853 = vpop.f32.mrb[0].mxu0
    %2854 = vdwg.mxu0
    %2855 = vmatprep.subr.bf16.mxu0 %v2212
    %2856 = vmatpush1.bf16.msra.mxu0 %v2211
    %2857 = vmatprep.subr.bf16.mxu0 %v2217
    %2858 = vmatpush1.bf16.msra.mxu0 %v2216
    %2859 = vmatprep.subr.bf16.mxu0 %v2222
    %2860 = vmatpush1.bf16.msra.mxu0 %v2221
    %2861 = vmatprep.subr.bf16.mxu0 %v2227
    %2862 = vmatpush1.bf16.msra.mxu0 %v2226
    %2863 = vmatprep.subr.bf16.mxu0 %v2232
    %2864 = vmatpush1.bf16.msra.mxu0 %v2231
    %2865 = vmatprep.subr.bf16.mxu0 %v2237
    %2866 = vmatpush1.bf16.msra.mxu0 %v2236
    %2867 = vmatprep.subr.bf16.mxu0 %v2242
    %2868 = vmatpush1.bf16.msra.mxu0 %v2241
    %2869 = vmatprep.subr.bf16.mxu0 %v2247
    %2870 = vmatpush1.bf16.msra.mxu0 %v2246
    %2871 = vmatprep.subr.bf16.mxu0 %v2252
    %2872 = vmatpush1.bf16.msra.mxu0 %v2251
    %2873 = vmatprep.subr.bf16.mxu0 %v2257
    %2874 = vmatpush1.bf16.msra.mxu0 %v2256
    %2875 = vmatprep.subr.bf16.mxu0 %v2262
    %2876 = vmatpush1.bf16.msra.mxu0 %v2261
    %2877 = vmatprep.subr.bf16.mxu0 %v2267
    %2878 = vmatpush1.bf16.msra.mxu0 %v2266
    %2879 = vmatprep.subr.bf16.mxu0 %v2272
    %2880 = vmatpush1.bf16.msra.mxu0 %v2271
    %2881 = vmatprep.subr.bf16.mxu0 %v2277
    %2882 = vmatpush1.bf16.msra.mxu0 %v2276
    %2883 = vmatprep.subr.bf16.mxu0 %v2282
    %2884 = vmatpush1.bf16.msra.mxu0 %v2281
    %2885 = vmatprep.subr.bf16.mxu0 %v2287
    %2886 = vmatpush1.bf16.msra.mxu0 %v2286
    %2887 = vmatprep.mubr.bf16.mxu0 %v103
    %2888 = vmatmul.mubr.bf16.gmra.mrb[0].mxu0 %v102
    %v2889 = vpop.f32.mrb[0].mxu0
    %v2890 = vadd.f32 %v2849, %v2889
    %v2891 = vpop.f32.mrb[0].mxu0
    %v2892 = vadd.f32 %v2851, %v2891
    %v2893 = vpop.f32.mrb[0].mxu0
    %v2894 = vpop.f32.mrb[0].mxu0
    %2895 = vdwg.mxu0
    %2896 = vmatprep.subr.bf16.mxu0 %v1894
    %2897 = vmatpush1.bf16.msra.mxu0 %v1893
    %2898 = vmatprep.subr.bf16.mxu0 %v1899
    %2899 = vmatpush1.bf16.msra.mxu0 %v1898
    %2900 = vmatprep.subr.bf16.mxu0 %v1904
    %2901 = vmatpush1.bf16.msra.mxu0 %v1903
    %2902 = vmatprep.subr.bf16.mxu0 %v1909
    %2903 = vmatpush1.bf16.msra.mxu0 %v1908
    %2904 = vmatprep.subr.bf16.mxu0 %v1914
    %2905 = vmatpush1.bf16.msra.mxu0 %v1913
    %2906 = vmatprep.subr.bf16.mxu0 %v1919
    %2907 = vmatpush1.bf16.msra.mxu0 %v1918
    %2908 = vmatprep.subr.bf16.mxu0 %v1924
    %2909 = vmatpush1.bf16.msra.mxu0 %v1923
    %2910 = vmatprep.subr.bf16.mxu0 %v1929
    %2911 = vmatpush1.bf16.msra.mxu0 %v1928
    %2912 = vmatprep.subr.bf16.mxu0 %v1934
    %2913 = vmatpush1.bf16.msra.mxu0 %v1933
    %2914 = vmatprep.subr.bf16.mxu0 %v1939
    %2915 = vmatpush1.bf16.msra.mxu0 %v1938
    %2916 = vmatprep.subr.bf16.mxu0 %v1944
    %2917 = vmatpush1.bf16.msra.mxu0 %v1943
    %2918 = vmatprep.subr.bf16.mxu0 %v1949
    %2919 = vmatpush1.bf16.msra.mxu0 %v1948
    %2920 = vmatprep.subr.bf16.mxu0 %v1954
    %2921 = vmatpush1.bf16.msra.mxu0 %v1953
    %2922 = vmatprep.subr.bf16.mxu0 %v1959
    %2923 = vmatpush1.bf16.msra.mxu0 %v1958
    %2924 = vmatprep.subr.bf16.mxu0 %v1964
    %2925 = vmatpush1.bf16.msra.mxu0 %v1963
    %2926 = vmatprep.subr.bf16.mxu0 %v1969
    %2927 = vmatpush1.bf16.msra.mxu0 %v1968
    %2928 = vmatprep.mubr.bf16.mxu0 %v95
    %2929 = vmatmul.mubr.bf16.gmra.mrb[0].mxu0 %v94
    %v2930 = vpop.f32.mrb[0].mxu0
    %v2931 = vadd.f32 %v597, %v2930
    %v2932 = vpop.f32.mrb[0].mxu0
    %v2933 = vadd.f32 %v601, %v2932
    %v2934 = vpop.f32.mrb[0].mxu0
    %v2935 = vpop.f32.mrb[0].mxu0
    %2936 = vdwg.mxu0
    %2937 = vmatprep.subr.bf16.mxu0 %v1974
    %2938 = vmatpush1.bf16.msra.mxu0 %v1973
    %2939 = vmatprep.subr.bf16.mxu0 %v1979
    %2940 = vmatpush1.bf16.msra.mxu0 %v1978
    %2941 = vmatprep.subr.bf16.mxu0 %v1984
    %2942 = vmatpush1.bf16.msra.mxu0 %v1983
    %2943 = vmatprep.subr.bf16.mxu0 %v1989
    %2944 = vmatpush1.bf16.msra.mxu0 %v1988
    %2945 = vmatprep.subr.bf16.mxu0 %v1994
    %2946 = vmatpush1.bf16.msra.mxu0 %v1993
    %2947 = vmatprep.subr.bf16.mxu0 %v1999
    %2948 = vmatpush1.bf16.msra.mxu0 %v1998
    %2949 = vmatprep.subr.bf16.mxu0 %v2004
    %2950 = vmatpush1.bf16.msra.mxu0 %v2003
    %2951 = vmatprep.subr.bf16.mxu0 %v2009
    %2952 = vmatpush1.bf16.msra.mxu0 %v2008
    %2953 = vmatprep.subr.bf16.mxu0 %v2014
    %2954 = vmatpush1.bf16.msra.mxu0 %v2013
    %2955 = vmatprep.subr.bf16.mxu0 %v2019
    %2956 = vmatpush1.bf16.msra.mxu0 %v2018
    %2957 = vmatprep.subr.bf16.mxu0 %v2024
    %2958 = vmatpush1.bf16.msra.mxu0 %v2023
    %2959 = vmatprep.subr.bf16.mxu0 %v2029
    %2960 = vmatpush1.bf16.msra.mxu0 %v2028
    %2961 = vmatprep.subr.bf16.mxu0 %v2034
    %2962 = vmatpush1.bf16.msra.mxu0 %v2033
    %2963 = vmatprep.subr.bf16.mxu0 %v2039
    %2964 = vmatpush1.bf16.msra.mxu0 %v2038
    %2965 = vmatprep.subr.bf16.mxu0 %v2044
    %2966 = vmatpush1.bf16.msra.mxu0 %v2043
    %2967 = vmatprep.subr.bf16.mxu0 %v2049
    %2968 = vmatpush1.bf16.msra.mxu0 %v2048
    %2969 = vmatprep.mubr.bf16.mxu0 %v97
    %2970 = vmatmul.mubr.bf16.gmra.mrb[0].mxu0 %v96
    %v2971 = vpop.f32.mrb[0].mxu0
    %v2972 = vadd.f32 %v2931, %v2971
    %v2973 = vpop.f32.mrb[0].mxu0
    %v2974 = vadd.f32 %v2933, %v2973
    %v2975 = vpop.f32.mrb[0].mxu0
    %v2976 = vpop.f32.mrb[0].mxu0
    %2977 = vdwg.mxu0
    %2978 = vmatprep.subr.bf16.mxu0 %v2054
    %2979 = vmatpush1.bf16.msra.mxu0 %v2053
    %2980 = vmatprep.subr.bf16.mxu0 %v2059
    %2981 = vmatpush1.bf16.msra.mxu0 %v2058
    %2982 = vmatprep.subr.bf16.mxu0 %v2064
    %2983 = vmatpush1.bf16.msra.mxu0 %v2063
    %2984 = vmatprep.subr.bf16.mxu0 %v2069
    %2985 = vmatpush1.bf16.msra.mxu0 %v2068
    %2986 = vmatprep.subr.bf16.mxu0 %v2074
    %2987 = vmatpush1.bf16.msra.mxu0 %v2073
    %2988 = vmatprep.subr.bf16.mxu0 %v2079
    %2989 = vmatpush1.bf16.msra.mxu0 %v2078
    %2990 = vmatprep.subr.bf16.mxu0 %v2084
    %2991 = vmatpush1.bf16.msra.mxu0 %v2083
    %2992 = vmatprep.subr.bf16.mxu0 %v2089
    %2993 = vmatpush1.bf16.msra.mxu0 %v2088
    %2994 = vmatprep.subr.bf16.mxu0 %v2094
    %2995 = vmatpush1.bf16.msra.mxu0 %v2093
    %2996 = vmatprep.subr.bf16.mxu0 %v2099
    %2997 = vmatpush1.bf16.msra.mxu0 %v2098
    %2998 = vmatprep.subr.bf16.mxu0 %v2104
    %2999 = vmatpush1.bf16.msra.mxu0 %v2103
    %3000 = vmatprep.subr.bf16.mxu0 %v2109
    %3001 = vmatpush1.bf16.msra.mxu0 %v2108
    %3002 = vmatprep.subr.bf16.mxu0 %v2114
    %3003 = vmatpush1.bf16.msra.mxu0 %v2113
    %3004 = vmatprep.subr.bf16.mxu0 %v2119
    %3005 = vmatpush1.bf16.msra.mxu0 %v2118
    %3006 = vmatprep.subr.bf16.mxu0 %v2124
    %3007 = vmatpush1.bf16.msra.mxu0 %v2123
    %3008 = vmatprep.subr.bf16.mxu0 %v2129
    %3009 = vmatpush1.bf16.msra.mxu0 %v2128
    %3010 = vmatprep.mubr.bf16.mxu0 %v99
    %3011 = vmatmul.mubr.bf16.gmra.mrb[0].mxu0 %v98
    %v3012 = vpop.f32.mrb[0].mxu0
    %v3013 = vadd.f32 %v2972, %v3012
    %v3014 = vpop.f32.mrb[0].mxu0
    %v3015 = vadd.f32 %v2974, %v3014
    %v3016 = vpop.f32.mrb[0].mxu0
    %v3017 = vpop.f32.mrb[0].mxu0
    %3018 = vdwg.mxu0
    %3019 = vmatprep.subr.bf16.mxu0 %v2134
    %3020 = vmatpush1.bf16.msra.mxu0 %v2133
    %3021 = vmatprep.subr.bf16.mxu0 %v2139
    %3022 = vmatpush1.bf16.msra.mxu0 %v2138
    %3023 = vmatprep.subr.bf16.mxu0 %v2144
    %3024 = vmatpush1.bf16.msra.mxu0 %v2143
    %3025 = vmatprep.subr.bf16.mxu0 %v2149
    %3026 = vmatpush1.bf16.msra.mxu0 %v2148
    %3027 = vmatprep.subr.bf16.mxu0 %v2154
    %3028 = vmatpush1.bf16.msra.mxu0 %v2153
    %3029 = vmatprep.subr.bf16.mxu0 %v2159
    %3030 = vmatpush1.bf16.msra.mxu0 %v2158
    %3031 = vmatprep.subr.bf16.mxu0 %v2164
    %3032 = vmatpush1.bf16.msra.mxu0 %v2163
    %3033 = vmatprep.subr.bf16.mxu0 %v2169
    %3034 = vmatpush1.bf16.msra.mxu0 %v2168
    %3035 = vmatprep.subr.bf16.mxu0 %v2174
    %3036 = vmatpush1.bf16.msra.mxu0 %v2173
    %3037 = vmatprep.subr.bf16.mxu0 %v2179
    %3038 = vmatpush1.bf16.msra.mxu0 %v2178
    %3039 = vmatprep.subr.bf16.mxu0 %v2184
    %3040 = vmatpush1.bf16.msra.mxu0 %v2183
    %3041 = vmatprep.subr.bf16.mxu0 %v2189
    %3042 = vmatpush1.bf16.msra.mxu0 %v2188
    %3043 = vmatprep.subr.bf16.mxu0 %v2194
    %3044 = vmatpush1.bf16.msra.mxu0 %v2193
    %3045 = vmatprep.subr.bf16.mxu0 %v2199
    %3046 = vmatpush1.bf16.msra.mxu0 %v2198
    %3047 = vmatprep.subr.bf16.mxu0 %v2204
    %3048 = vmatpush1.bf16.msra.mxu0 %v2203
    %3049 = vmatprep.subr.bf16.mxu0 %v2209
    %3050 = vmatpush1.bf16.msra.mxu0 %v2208
    %3051 = vmatprep.mubr.bf16.mxu0 %v101
    %3052 = vmatmul.mubr.bf16.gmra.mrb[0].mxu0 %v100
    %v3053 = vpop.f32.mrb[0].mxu0
    %v3054 = vadd.f32 %v3013, %v3053
    %v3055 = vpop.f32.mrb[0].mxu0
    %v3056 = vadd.f32 %v3015, %v3055
    %v3057 = vpop.f32.mrb[0].mxu0
    %v3058 = vpop.f32.mrb[0].mxu0
    %3059 = vdwg.mxu0
    %3060 = vmatprep.subr.bf16.mxu0 %v2214
    %3061 = vmatpush1.bf16.msra.mxu0 %v2213
    %3062 = vmatprep.subr.bf16.mxu0 %v2219
    %3063 = vmatpush1.bf16.msra.mxu0 %v2218
    %3064 = vmatprep.subr.bf16.mxu0 %v2224
    %3065 = vmatpush1.bf16.msra.mxu0 %v2223
    %3066 = vmatprep.subr.bf16.mxu0 %v2229
    %3067 = vmatpush1.bf16.msra.mxu0 %v2228
    %3068 = vmatprep.subr.bf16.mxu0 %v2234
    %3069 = vmatpush1.bf16.msra.mxu0 %v2233
    %3070 = vmatprep.subr.bf16.mxu0 %v2239
    %3071 = vmatpush1.bf16.msra.mxu0 %v2238
    %3072 = vmatprep.subr.bf16.mxu0 %v2244
    %3073 = vmatpush1.bf16.msra.mxu0 %v2243
    %3074 = vmatprep.subr.bf16.mxu0 %v2249
    %3075 = vmatpush1.bf16.msra.mxu0 %v2248
    %3076 = vmatprep.subr.bf16.mxu0 %v2254
    %3077 = vmatpush1.bf16.msra.mxu0 %v2253
    %3078 = vmatprep.subr.bf16.mxu0 %v2259
    %3079 = vmatpush1.bf16.msra.mxu0 %v2258
    %3080 = vmatprep.subr.bf16.mxu0 %v2264
    %3081 = vmatpush1.bf16.msra.mxu0 %v2263
    %3082 = vmatprep.subr.bf16.mxu0 %v2269
    %3083 = vmatpush1.bf16.msra.mxu0 %v2268
    %3084 = vmatprep.subr.bf16.mxu0 %v2274
    %3085 = vmatpush1.bf16.msra.mxu0 %v2273
    %3086 = vmatprep.subr.bf16.mxu0 %v2279
    %3087 = vmatpush1.bf16.msra.mxu0 %v2278
    %3088 = vmatprep.subr.bf16.mxu0 %v2284
    %3089 = vmatpush1.bf16.msra.mxu0 %v2283
    %3090 = vmatprep.subr.bf16.mxu0 %v2289
    %3091 = vmatpush1.bf16.msra.mxu0 %v2288
    %3092 = vmatprep.mubr.bf16.mxu0 %v103
    %3093 = vmatmul.mubr.bf16.gmra.mrb[0].mxu0 %v102
    %v3094 = vpop.f32.mrb[0].mxu0
    %v3095 = vadd.f32 %v3054, %v3094
    %v3096 = vpop.f32.mrb[0].mxu0
    %v3097 = vadd.f32 %v3056, %v3096
    %v3098 = vpop.f32.mrb[0].mxu0
    %v3099 = vpop.f32.mrb[0].mxu0
    %3100 = vdwg.mxu0
    %3101 = vmatprep.subr.bf16.mxu0 0
    %3102 = vmatpush1.bf16.msra.mxu0 %v1895
    %3103 = vmatprep.subr.bf16.mxu0 0
    %3104 = vmatpush1.bf16.msra.mxu0 %v1900
    %3105 = vmatprep.subr.bf16.mxu0 0
    %3106 = vmatpush1.bf16.msra.mxu0 %v1905
    %3107 = vmatprep.subr.bf16.mxu0 0
    %3108 = vmatpush1.bf16.msra.mxu0 %v1910
    %3109 = vmatprep.subr.bf16.mxu0 0
    %3110 = vmatpush1.bf16.msra.mxu0 %v1915
    %3111 = vmatprep.subr.bf16.mxu0 0
    %3112 = vmatpush1.bf16.msra.mxu0 %v1920
    %3113 = vmatprep.subr.bf16.mxu0 0
    %3114 = vmatpush1.bf16.msra.mxu0 %v1925
    %3115 = vmatprep.subr.bf16.mxu0 0
    %3116 = vmatpush1.bf16.msra.mxu0 %v1930
    %3117 = vmatprep.subr.bf16.mxu0 0
    %3118 = vmatpush1.bf16.msra.mxu0 %v1935
    %3119 = vmatprep.subr.bf16.mxu0 0
    %3120 = vmatpush1.bf16.msra.mxu0 %v1940
    %3121 = vmatprep.subr.bf16.mxu0 0
    %3122 = vmatpush1.bf16.msra.mxu0 %v1945
    %3123 = vmatprep.subr.bf16.mxu0 0
    %3124 = vmatpush1.bf16.msra.mxu0 %v1950
    %3125 = vmatprep.subr.bf16.mxu0 0
    %3126 = vmatpush1.bf16.msra.mxu0 %v1955
    %3127 = vmatprep.subr.bf16.mxu0 0
    %3128 = vmatpush1.bf16.msra.mxu0 %v1960
    %3129 = vmatprep.subr.bf16.mxu0 0
    %3130 = vmatpush1.bf16.msra.mxu0 %v1965
    %3131 = vmatprep.subr.bf16.mxu0 0
    %3132 = vmatpush1.bf16.msra.mxu0 %v1970
    %3133 = vmatprep.mubr.bf16.mxu0 %v95
    %3134 = vmatmul.mubr.bf16.gmra.mrb[0].mxu0 %v94
    %v3135 = vpop.f32.mrb[0].mxu0
    %v3136 = vadd.f32 %v605, %v3135
    %v3137 = vpop.f32.mrb[0].mxu0
    %v3138 = vpop.f32.mrb[0].mxu0
    %v3139 = vpop.f32.mrb[0].mxu0
    %3140 = vdwg.mxu0
    %3141 = vmatprep.subr.bf16.mxu0 0
    %3142 = vmatpush1.bf16.msra.mxu0 %v1975
    %3143 = vmatprep.subr.bf16.mxu0 0
    %3144 = vmatpush1.bf16.msra.mxu0 %v1980
    %3145 = vmatprep.subr.bf16.mxu0 0
    %3146 = vmatpush1.bf16.msra.mxu0 %v1985
    %3147 = vmatprep.subr.bf16.mxu0 0
    %3148 = vmatpush1.bf16.msra.mxu0 %v1990
    %3149 = vmatprep.subr.bf16.mxu0 0
    %3150 = vmatpush1.bf16.msra.mxu0 %v1995
    %3151 = vmatprep.subr.bf16.mxu0 0
    %3152 = vmatpush1.bf16.msra.mxu0 %v2000
    %3153 = vmatprep.subr.bf16.mxu0 0
    %3154 = vmatpush1.bf16.msra.mxu0 %v2005
    %3155 = vmatprep.subr.bf16.mxu0 0
    %3156 = vmatpush1.bf16.msra.mxu0 %v2010
    %3157 = vmatprep.subr.bf16.mxu0 0
    %3158 = vmatpush1.bf16.msra.mxu0 %v2015
    %3159 = vmatprep.subr.bf16.mxu0 0
    %3160 = vmatpush1.bf16.msra.mxu0 %v2020
    %3161 = vmatprep.subr.bf16.mxu0 0
    %3162 = vmatpush1.bf16.msra.mxu0 %v2025
    %3163 = vmatprep.subr.bf16.mxu0 0
    %3164 = vmatpush1.bf16.msra.mxu0 %v2030
    %3165 = vmatprep.subr.bf16.mxu0 0
    %3166 = vmatpush1.bf16.msra.mxu0 %v2035
    %3167 = vmatprep.subr.bf16.mxu0 0
    %3168 = vmatpush1.bf16.msra.mxu0 %v2040
    %3169 = vmatprep.subr.bf16.mxu0 0
    %3170 = vmatpush1.bf16.msra.mxu0 %v2045
    %3171 = vmatprep.subr.bf16.mxu0 0
    %3172 = vmatpush1.bf16.msra.mxu0 %v2050
    %3173 = vmatprep.mubr.bf16.mxu0 %v97
    %3174 = vmatmul.mubr.bf16.gmra.mrb[0].mxu0 %v96
    %v3175 = vpop.f32.mrb[0].mxu0
    %v3176 = vadd.f32 %v3136, %v3175
    %v3177 = vpop.f32.mrb[0].mxu0
    %v3178 = vpop.f32.mrb[0].mxu0
    %v3179 = vpop.f32.mrb[0].mxu0
    %3180 = vdwg.mxu0
    %3181 = vmatprep.subr.bf16.mxu0 0
    %3182 = vmatpush1.bf16.msra.mxu0 %v2055
    %3183 = vmatprep.subr.bf16.mxu0 0
    %3184 = vmatpush1.bf16.msra.mxu0 %v2060
    %3185 = vmatprep.subr.bf16.mxu0 0
    %3186 = vmatpush1.bf16.msra.mxu0 %v2065
    %3187 = vmatprep.subr.bf16.mxu0 0
    %3188 = vmatpush1.bf16.msra.mxu0 %v2070
    %3189 = vmatprep.subr.bf16.mxu0 0
    %3190 = vmatpush1.bf16.msra.mxu0 %v2075
    %3191 = vmatprep.subr.bf16.mxu0 0
    %3192 = vmatpush1.bf16.msra.mxu0 %v2080
    %3193 = vmatprep.subr.bf16.mxu0 0
    %3194 = vmatpush1.bf16.msra.mxu0 %v2085
    %3195 = vmatprep.subr.bf16.mxu0 0
    %3196 = vmatpush1.bf16.msra.mxu0 %v2090
    %3197 = vmatprep.subr.bf16.mxu0 0
    %3198 = vmatpush1.bf16.msra.mxu0 %v2095
    %3199 = vmatprep.subr.bf16.mxu0 0
    %3200 = vmatpush1.bf16.msra.mxu0 %v2100
    %3201 = vmatprep.subr.bf16.mxu0 0
    %3202 = vmatpush1.bf16.msra.mxu0 %v2105
    %3203 = vmatprep.subr.bf16.mxu0 0
    %3204 = vmatpush1.bf16.msra.mxu0 %v2110
    %3205 = vmatprep.subr.bf16.mxu0 0
    %3206 = vmatpush1.bf16.msra.mxu0 %v2115
    %3207 = vmatprep.subr.bf16.mxu0 0
    %3208 = vmatpush1.bf16.msra.mxu0 %v2120
    %3209 = vmatprep.subr.bf16.mxu0 0
    %3210 = vmatpush1.bf16.msra.mxu0 %v2125
    %3211 = vmatprep.subr.bf16.mxu0 0
    %3212 = vmatpush1.bf16.msra.mxu0 %v2130
    %3213 = vmatprep.mubr.bf16.mxu0 %v99
    %3214 = vmatmul.mubr.bf16.gmra.mrb[0].mxu0 %v98
    %v3215 = vpop.f32.mrb[0].mxu0
    %v3216 = vadd.f32 %v3176, %v3215
    %v3217 = vpop.f32.mrb[0].mxu0
    %v3218 = vpop.f32.mrb[0].mxu0
    %v3219 = vpop.f32.mrb[0].mxu0
    %3220 = vdwg.mxu0
    %3221 = vmatprep.subr.bf16.mxu0 0
    %3222 = vmatpush1.bf16.msra.mxu0 %v2135
    %3223 = vmatprep.subr.bf16.mxu0 0
    %3224 = vmatpush1.bf16.msra.mxu0 %v2140
    %3225 = vmatprep.subr.bf16.mxu0 0
    %3226 = vmatpush1.bf16.msra.mxu0 %v2145
    %3227 = vmatprep.subr.bf16.mxu0 0
    %3228 = vmatpush1.bf16.msra.mxu0 %v2150
    %3229 = vmatprep.subr.bf16.mxu0 0
    %3230 = vmatpush1.bf16.msra.mxu0 %v2155
    %3231 = vmatprep.subr.bf16.mxu0 0
    %3232 = vmatpush1.bf16.msra.mxu0 %v2160
    %3233 = vmatprep.subr.bf16.mxu0 0
    %3234 = vmatpush1.bf16.msra.mxu0 %v2165
    %3235 = vmatprep.subr.bf16.mxu0 0
    %3236 = vmatpush1.bf16.msra.mxu0 %v2170
    %3237 = vmatprep.subr.bf16.mxu0 0
    %3238 = vmatpush1.bf16.msra.mxu0 %v2175
    %3239 = vmatprep.subr.bf16.mxu0 0
    %3240 = vmatpush1.bf16.msra.mxu0 %v2180
    %3241 = vmatprep.subr.bf16.mxu0 0
    %3242 = vmatpush1.bf16.msra.mxu0 %v2185
    %3243 = vmatprep.subr.bf16.mxu0 0
    %3244 = vmatpush1.bf16.msra.mxu0 %v2190
    %3245 = vmatprep.subr.bf16.mxu0 0
    %3246 = vmatpush1.bf16.msra.mxu0 %v2195
    %3247 = vmatprep.subr.bf16.mxu0 0
    %3248 = vmatpush1.bf16.msra.mxu0 %v2200
    %3249 = vmatprep.subr.bf16.mxu0 0
    %3250 = vmatpush1.bf16.msra.mxu0 %v2205
    %3251 = vmatprep.subr.bf16.mxu0 0
    %3252 = vmatpush1.bf16.msra.mxu0 %v2210
    %3253 = vmatprep.mubr.bf16.mxu0 %v101
    %3254 = vmatmul.mubr.bf16.gmra.mrb[0].mxu0 %v100
    %v3255 = vpop.f32.mrb[0].mxu0
    %v3256 = vadd.f32 %v3216, %v3255
    %v3257 = vpop.f32.mrb[0].mxu0
    %v3258 = vpop.f32.mrb[0].mxu0
    %v3259 = vpop.f32.mrb[0].mxu0
    %3260 = vdwg.mxu0
    %3261 = vmatprep.subr.bf16.mxu0 0
    %3262 = vmatpush1.bf16.msra.mxu0 %v2215
    %3263 = vmatprep.subr.bf16.mxu0 0
    %3264 = vmatpush1.bf16.msra.mxu0 %v2220
    %3265 = vmatprep.subr.bf16.mxu0 0
    %3266 = vmatpush1.bf16.msra.mxu0 %v2225
    %3267 = vmatprep.subr.bf16.mxu0 0
    %3268 = vmatpush1.bf16.msra.mxu0 %v2230
    %3269 = vmatprep.subr.bf16.mxu0 0
    %3270 = vmatpush1.bf16.msra.mxu0 %v2235
    %3271 = vmatprep.subr.bf16.mxu0 0
    %3272 = vmatpush1.bf16.msra.mxu0 %v2240
    %3273 = vmatprep.subr.bf16.mxu0 0
    %3274 = vmatpush1.bf16.msra.mxu0 %v2245
    %3275 = vmatprep.subr.bf16.mxu0 0
    %3276 = vmatpush1.bf16.msra.mxu0 %v2250
    %3277 = vmatprep.subr.bf16.mxu0 0
    %3278 = vmatpush1.bf16.msra.mxu0 %v2255
    %3279 = vmatprep.subr.bf16.mxu0 0
    %3280 = vmatpush1.bf16.msra.mxu0 %v2260
    %3281 = vmatprep.subr.bf16.mxu0 0
    %3282 = vmatpush1.bf16.msra.mxu0 %v2265
    %3283 = vmatprep.subr.bf16.mxu0 0
    %3284 = vmatpush1.bf16.msra.mxu0 %v2270
    %3285 = vmatprep.subr.bf16.mxu0 0
    %3286 = vmatpush1.bf16.msra.mxu0 %v2275
    %3287 = vmatprep.subr.bf16.mxu0 0
    %3288 = vmatpush1.bf16.msra.mxu0 %v2280
    %3289 = vmatprep.subr.bf16.mxu0 0
    %3290 = vmatpush1.bf16.msra.mxu0 %v2285
    %3291 = vmatprep.subr.bf16.mxu0 0
    %3292 = vmatpush1.bf16.msra.mxu0 %v2290
    %3293 = vmatprep.mubr.bf16.mxu0 %v103
    %3294 = vmatmul.mubr.bf16.gmra.mrb[0].mxu0 %v102
    %v3295 = vpop.f32.mrb[0].mxu0
    %v3296 = vadd.f32 %v3256, %v3295
    %v3297 = vpop.f32.mrb[0].mxu0
    %v3298 = vpop.f32.mrb[0].mxu0
    %v3299 = vpop.f32.mrb[0].mxu0
    %3300 = vdwg.mxu0
    %v3301 = vxor.u32 %v2890, 2147483648
    %v3302 = vxor.u32 %v2892, 2147483648
    %v3303 = vxor.u32 %v3095, 2147483648
    %v3304 = vxor.u32 %v3097, 2147483648
    %v3305 = vxor.u32 %v3296, 2147483648
    %v3306 = vmul.f32 %v3301, 1.442695
    %v3307 = vpow.pop %v3306
    %v3308 = vmul.f32 %v3302, 1.442695
    %v3309 = vpow.pop %v3308
    %v3310 = vmul.f32 %v3303, 1.442695
    %v3311 = vpow.pop %v3310
    %v3312 = vmul.f32 %v3304, 1.442695
    %v3313 = vpow.pop %v3312
    %v3314 = vmul.f32 %v3305, 1.442695
    %v3315 = vpow.pop %v3314
    %v3316 = vadd.f32 %v3307, 1.0
    %v3317 = vadd.f32 %v3309, 1.0
    %v3318 = vadd.f32 %v3311, 1.0
    %v3319 = vadd.f32 %v3313, 1.0
    %v3320 = vadd.f32 %v3315, 1.0
    %v3321 = vrcp.pop %v3316
    %v3322 = vmul.f32 1.0, %v3321
    %v3323 = vrcp.pop %v3317
    %v3324 = vmul.f32 1.0, %v3323
    %v3325 = vrcp.pop %v3318
    %v3326 = vmul.f32 1.0, %v3325
    %v3327 = vrcp.pop %v3319
    %v3328 = vmul.f32 1.0, %v3327
    %v3329 = vrcp.pop %v3320
    %v3330 = vmul.f32 1.0, %v3329
    %v3331 = vmul.f32 %v2890, %v3322
    %v3332 = vmul.f32 %v2892, %v3324
    %v3333 = vmul.f32 %v3095, %v3326
    %v3334 = vmul.f32 %v3097, %v3328
    %v3335 = vmul.f32 %v3296, %v3330
    %v3336 = vpack.c.bf16 %v3331, %v3331
    %v3337 = vpack.c.bf16 %v3332, %v3332
    %v3338 = vpack.c.bf16 %v3333, %v3333
    %v3339 = vpack.c.bf16 %v3334, %v3334
    %v3340 = vpack.c.bf16 %v3335, %v3335
    %v3341 = vld [vmem:[#allocation8] sm:$0xf]
    %v3342 = vld [vmem:[#allocation8 + $0x4] sm:$0xf]
    %v3343 = vld [vmem:[#allocation8 + $0x8] sm:$0xf]
    %v3344 = vld [vmem:[#allocation8 + $0xc] sm:$0xf]
    %v3345 = vld [vmem:[#allocation8 + $0x10] sm:$0xf]
    %v3346 = vld [vmem:[#allocation8 + $0x14] sm:$0xf]
    %v3347 = vld [vmem:[#allocation8 + $0x18] sm:$0xf]
    %v3348 = vld [vmem:[#allocation8 + $0x1c] sm:$0xf]
    %v3349 = vld [vmem:[#allocation8 + $0x20] sm:$0xf]
    %v3350 = vld [vmem:[#allocation8 + $0x24] sm:$0xf]
    %v3351 = vld [vmem:[#allocation8 + $0x28] sm:$0xf]
    %v3352 = vld [vmem:[#allocation8 + $0x2c] sm:$0xf]
    %v3353 = vld [vmem:[#allocation8 + $0x30] sm:$0xf]
    %v3354 = vld [vmem:[#allocation8 + $0x34] sm:$0xf]
    %v3355 = vld [vmem:[#allocation8 + $0x38] sm:$0xf]
    %v3356 = vld [vmem:[#allocation8 + $0x3c] sm:$0xf]
    %v3357 = vld [vmem:[#allocation8 + $0x40] sm:$0xf]
    %v3358 = vld [vmem:[#allocation8 + $0x44] sm:$0xf]
    %v3359 = vld [vmem:[#allocation8 + $0x48] sm:$0xf]
    %v3360 = vld [vmem:[#allocation8 + $0x4c] sm:$0xf]
    %v3361 = vld [vmem:[#allocation8 + $0x50] sm:$0xf]
    %v3362 = vld [vmem:[#allocation8 + $0x54] sm:$0xf]
    %v3363 = vld [vmem:[#allocation8 + $0x58] sm:$0xf]
    %v3364 = vld [vmem:[#allocation8 + $0x5c] sm:$0xf]
    %v3365 = vld [vmem:[#allocation8 + $0x60] sm:$0xf]
    %v3366 = vld [vmem:[#allocation8 + $0x64] sm:$0xf]
    %v3367 = vld [vmem:[#allocation8 + $0x68] sm:$0xf]
    %v3368 = vld [vmem:[#allocation8 + $0x6c] sm:$0xf]
    %v3369 = vld [vmem:[#allocation8 + $0x70] sm:$0xf]
    %v3370 = vld [vmem:[#allocation8 + $0x74] sm:$0xf]
    %v3371 = vld [vmem:[#allocation8 + $0x78] sm:$0xf]
    %v3372 = vld [vmem:[#allocation8 + $0x7c] sm:$0xf]
    %v3373 = vld [vmem:[#allocation8 + $0x80] sm:$0xf]
    %v3374 = vld [vmem:[#allocation8 + $0x84] sm:$0xf]
    %v3375 = vld [vmem:[#allocation8 + $0x88] sm:$0xf]
    %v3376 = vld [vmem:[#allocation8 + $0x8c] sm:$0xf]
    %v3377 = vld [vmem:[#allocation8 + $0x90] sm:$0xf]
    %v3378 = vld [vmem:[#allocation8 + $0x94] sm:$0xf]
    %v3379 = vld [vmem:[#allocation8 + $0x98] sm:$0xf]
    %v3380 = vld [vmem:[#allocation8 + $0x9c] sm:$0xf]
    %v3381 = vld [vmem:[#allocation8 + $0xa0] sm:$0xf]
    %v3382 = vld [vmem:[#allocation8 + $0xa4] sm:$0xf]
    %v3383 = vld [vmem:[#allocation8 + $0xa8] sm:$0xf]
    %v3384 = vld [vmem:[#allocation8 + $0xac] sm:$0xf]
    %v3385 = vld [vmem:[#allocation8 + $0xb0] sm:$0xf]
    %v3386 = vld [vmem:[#allocation8 + $0xb4] sm:$0xf]
    %v3387 = vld [vmem:[#allocation8 + $0xb8] sm:$0xf]
    %v3388 = vld [vmem:[#allocation8 + $0xbc] sm:$0xf]
    %v3389 = vld [vmem:[#allocation8 + $0xc0] sm:$0xf]
    %v3390 = vld [vmem:[#allocation8 + $0xc4] sm:$0xf]
    %v3391 = vld [vmem:[#allocation8 + $0xc8] sm:$0xf]
    %v3392 = vld [vmem:[#allocation8 + $0xcc] sm:$0xf]
    %v3393 = vld [vmem:[#allocation8 + $0xd0] sm:$0xf]
    %v3394 = vld [vmem:[#allocation8 + $0xd4] sm:$0xf]
    %v3395 = vld [vmem:[#allocation8 + $0xd8] sm:$0xf]
    %v3396 = vld [vmem:[#allocation8 + $0xdc] sm:$0xf]
    %v3397 = vld [vmem:[#allocation8 + $0xe0] sm:$0xf]
    %v3398 = vld [vmem:[#allocation8 + $0xe4] sm:$0xf]
    %v3399 = vld [vmem:[#allocation8 + $0xe8] sm:$0xf]
    %v3400 = vld [vmem:[#allocation8 + $0xec] sm:$0xf]
    %v3401 = vld [vmem:[#allocation8 + $0xf0] sm:$0xf]
    %v3402 = vld [vmem:[#allocation8 + $0xf4] sm:$0xf]
    %v3403 = vld [vmem:[#allocation8 + $0xf8] sm:$0xf]
    %v3404 = vld [vmem:[#allocation8 + $0xfc] sm:$0xf]
    %v3405 = vld [vmem:[#allocation8 + $0x100] sm:$0xf]
    %v3406 = vld [vmem:[#allocation8 + $0x104] sm:$0xf]
    %v3407 = vld [vmem:[#allocation8 + $0x108] sm:$0xf]
    %v3408 = vld [vmem:[#allocation8 + $0x10c] sm:$0xf]
    %v3409 = vld [vmem:[#allocation8 + $0x110] sm:$0xf]
    %v3410 = vld [vmem:[#allocation8 + $0x114] sm:$0xf]
    %v3411 = vld [vmem:[#allocation8 + $0x118] sm:$0xf]
    %v3412 = vld [vmem:[#allocation8 + $0x11c] sm:$0xf]
    %v3413 = vld [vmem:[#allocation8 + $0x120] sm:$0xf]
    %v3414 = vld [vmem:[#allocation8 + $0x124] sm:$0xf]
    %v3415 = vld [vmem:[#allocation8 + $0x128] sm:$0xf]
    %v3416 = vld [vmem:[#allocation8 + $0x12c] sm:$0xf]
    %v3417 = vld [vmem:[#allocation8 + $0x130] sm:$0xf]
    %v3418 = vld [vmem:[#allocation8 + $0x134] sm:$0xf]
    %v3419 = vld [vmem:[#allocation8 + $0x138] sm:$0xf]
    %v3420 = vld [vmem:[#allocation8 + $0x13c] sm:$0xf]
    %v3421 = vld [vmem:[#allocation10] sm:$0x1]
    %v3423 = vlaneseq
    %v3424 = vshrl.u32 %v3423, 7
    %v3425 = vsub.s32 0, %v3424
    %v3426 = vrot.slane %v3421, %v3425
    %v3508 = vunpack.c.l.b16 %v3341
    %v3509 = vunpack.c.l.b16 %v3342
    %v3510 = vunpack.c.l.b16 %v3343
    %v3511 = vunpack.c.l.b16 %v3344
    %v3512 = vunpack.c.l.b16 %v3345
    %v3513 = vunpack.c.l.b16 %v3346
    %v3514 = vunpack.c.l.b16 %v3347
    %v3515 = vunpack.c.l.b16 %v3348
    %v3516 = vunpack.c.l.b16 %v3349
    %v3517 = vunpack.c.l.b16 %v3350
    %v3518 = vunpack.c.l.b16 %v3351
    %v3519 = vunpack.c.l.b16 %v3352
    %v3520 = vunpack.c.l.b16 %v3353
    %v3521 = vunpack.c.l.b16 %v3354
    %v3522 = vunpack.c.l.b16 %v3355
    %v3523 = vunpack.c.l.b16 %v3356
    %v3524 = vunpack.c.l.b16 %v3357
    %v3525 = vunpack.c.l.b16 %v3358
    %v3526 = vunpack.c.l.b16 %v3359
    %v3527 = vunpack.c.l.b16 %v3360
    %v3528 = vunpack.c.l.b16 %v3361
    %v3529 = vunpack.c.l.b16 %v3362
    %v3530 = vunpack.c.l.b16 %v3363
    %v3531 = vunpack.c.l.b16 %v3364
    %v3532 = vunpack.c.l.b16 %v3365
    %v3533 = vunpack.c.l.b16 %v3366
    %v3534 = vunpack.c.l.b16 %v3367
    %v3535 = vunpack.c.l.b16 %v3368
    %v3536 = vunpack.c.l.b16 %v3369
    %v3537 = vunpack.c.l.b16 %v3370
    %v3538 = vunpack.c.l.b16 %v3371
    %v3539 = vunpack.c.l.b16 %v3372
    %v3540 = vunpack.c.l.b16 %v3373
    %v3541 = vunpack.c.l.b16 %v3374
    %v3542 = vunpack.c.l.b16 %v3375
    %v3543 = vunpack.c.l.b16 %v3376
    %v3544 = vunpack.c.l.b16 %v3377
    %v3545 = vunpack.c.l.b16 %v3378
    %v3546 = vunpack.c.l.b16 %v3379
    %v3547 = vunpack.c.l.b16 %v3380
    %v3548 = vunpack.c.l.b16 %v3381
    %v3549 = vunpack.c.l.b16 %v3382
    %v3550 = vunpack.c.l.b16 %v3383
    %v3551 = vunpack.c.l.b16 %v3384
    %v3552 = vunpack.c.l.b16 %v3385
    %v3553 = vunpack.c.l.b16 %v3386
    %v3554 = vunpack.c.l.b16 %v3387
    %v3555 = vunpack.c.l.b16 %v3388
    %v3556 = vunpack.c.l.b16 %v3389
    %v3557 = vunpack.c.l.b16 %v3390
    %v3558 = vunpack.c.l.b16 %v3391
    %v3559 = vunpack.c.l.b16 %v3392
    %v3560 = vunpack.c.l.b16 %v3393
    %v3561 = vunpack.c.l.b16 %v3394
    %v3562 = vunpack.c.l.b16 %v3395
    %v3563 = vunpack.c.l.b16 %v3396
    %v3564 = vunpack.c.l.b16 %v3397
    %v3565 = vunpack.c.l.b16 %v3398
    %v3566 = vunpack.c.l.b16 %v3399
    %v3567 = vunpack.c.l.b16 %v3400
    %v3568 = vunpack.c.l.b16 %v3401
    %v3569 = vunpack.c.l.b16 %v3402
    %v3570 = vunpack.c.l.b16 %v3403
    %v3571 = vunpack.c.l.b16 %v3404
    %v3572 = vunpack.c.l.b16 %v3405
    %v3573 = vunpack.c.l.b16 %v3406
    %v3574 = vunpack.c.l.b16 %v3407
    %v3575 = vunpack.c.l.b16 %v3408
    %v3576 = vunpack.c.l.b16 %v3409
    %v3577 = vunpack.c.l.b16 %v3410
    %v3578 = vunpack.c.l.b16 %v3411
    %v3579 = vunpack.c.l.b16 %v3412
    %v3580 = vunpack.c.l.b16 %v3413
    %v3581 = vunpack.c.l.b16 %v3414
    %v3582 = vunpack.c.l.b16 %v3415
    %v3583 = vunpack.c.l.b16 %v3416
    %v3584 = vunpack.c.l.b16 %v3417
    %v3585 = vunpack.c.l.b16 %v3418
    %v3586 = vunpack.c.l.b16 %v3419
    %v3587 = vunpack.c.l.b16 %v3420
    %v3588 = vpack.c.b16 %v3509, %v3508
    %v3589 = vpack.c.b16 %v3511, %v3510
    %v3590 = vpack.c.b16 %v3513, %v3512
    %v3591 = vpack.c.b16 %v3515, %v3514
    %v3592 = vpack.c.b16 %v3517, %v3516
    %v3593 = vpack.c.b16 %v3519, %v3518
    %v3594 = vpack.c.b16 %v3521, %v3520
    %v3595 = vpack.c.b16 %v3523, %v3522
    %v3596 = vpack.c.b16 %v3525, %v3524
    %v3597 = vpack.c.b16 %v3527, %v3526
    %v3598 = vpack.c.b16 %v3529, %v3528
    %v3599 = vpack.c.b16 %v3531, %v3530
    %v3600 = vpack.c.b16 %v3533, %v3532
    %v3601 = vpack.c.b16 %v3535, %v3534
    %v3602 = vpack.c.b16 %v3537, %v3536
    %v3603 = vpack.c.b16 %v3539, %v3538
    %v3604 = vpack.c.b16 %v3541, %v3540
    %v3605 = vpack.c.b16 %v3543, %v3542
    %v3606 = vpack.c.b16 %v3545, %v3544
    %v3607 = vpack.c.b16 %v3547, %v3546
    %v3608 = vpack.c.b16 %v3549, %v3548
    %v3609 = vpack.c.b16 %v3551, %v3550
    %v3610 = vpack.c.b16 %v3553, %v3552
    %v3611 = vpack.c.b16 %v3555, %v3554
    %v3612 = vpack.c.b16 %v3557, %v3556
    %v3613 = vpack.c.b16 %v3559, %v3558
    %v3614 = vpack.c.b16 %v3561, %v3560
    %v3615 = vpack.c.b16 %v3563, %v3562
    %v3616 = vpack.c.b16 %v3565, %v3564
    %v3617 = vpack.c.b16 %v3567, %v3566
    %v3618 = vpack.c.b16 %v3569, %v3568
    %v3619 = vpack.c.b16 %v3571, %v3570
    %v3620 = vpack.c.b16 %v3573, %v3572
    %v3621 = vpack.c.b16 %v3575, %v3574
    %v3622 = vpack.c.b16 %v3577, %v3576
    %v3623 = vpack.c.b16 %v3579, %v3578
    %v3624 = vpack.c.b16 %v3581, %v3580
    %v3625 = vpack.c.b16 %v3583, %v3582
    %v3626 = vpack.c.b16 %v3585, %v3584
    %v3627 = vpack.c.b16 %v3587, %v3586
    %3668 = vmatprep.subr.bf16.mxu0 0
    %3669 = vmatpush1.bf16.msra.mxu0 %v3588
    %3670 = vmatprep.subr.bf16.mxu0 0
    %3671 = vmatpush1.bf16.msra.mxu0 %v3589
    %3672 = vmatprep.subr.bf16.mxu0 0
    %3673 = vmatpush1.bf16.msra.mxu0 %v3590
    %3674 = vmatprep.subr.bf16.mxu0 0
    %3675 = vmatpush1.bf16.msra.mxu0 %v3591
    %3676 = vmatprep.subr.bf16.mxu0 0
    %3677 = vmatpush1.bf16.msra.mxu0 %v3592
    %3678 = vmatprep.subr.bf16.mxu0 0
    %3679 = vmatpush1.bf16.msra.mxu0 %v3593
    %3680 = vmatprep.subr.bf16.mxu0 0
    %3681 = vmatpush1.bf16.msra.mxu0 %v3594
    %3682 = vmatprep.subr.bf16.mxu0 0
    %3683 = vmatpush1.bf16.msra.mxu0 %v3595
    %3684 = vmatprep.subr.bf16.mxu0 0
    %3685 = vmatpush1.bf16.msra.mxu0 %v3596
    %3686 = vmatprep.subr.bf16.mxu0 0
    %3687 = vmatpush1.bf16.msra.mxu0 %v3597
    %3688 = vmatprep.subr.bf16.mxu0 0
    %3689 = vmatpush1.bf16.msra.mxu0 %v3598
    %3690 = vmatprep.subr.bf16.mxu0 0
    %3691 = vmatpush1.bf16.msra.mxu0 %v3599
    %3692 = vmatprep.subr.bf16.mxu0 0
    %3693 = vmatpush1.bf16.msra.mxu0 %v3600
    %3694 = vmatprep.subr.bf16.mxu0 0
    %3695 = vmatpush1.bf16.msra.mxu0 %v3601
    %3696 = vmatprep.subr.bf16.mxu0 0
    %3697 = vmatpush1.bf16.msra.mxu0 %v3602
    %3698 = vmatprep.subr.bf16.mxu0 0
    %3699 = vmatpush1.bf16.msra.mxu0 %v3603
    %3700 = vmatprep.mubr.bf16.mxu0 %v3337
    %3701 = vmatmul.mubr.bf16.gmra.mrb[0].mxu0 %v3336
    %v3702 = vpop.f32.mrb[0].mxu0
    %v3703 = vadd.f32 %v3426, %v3702
    %v3704 = vpop.f32.mrb[0].mxu0
    %v3705 = vpop.f32.mrb[0].mxu0
    %v3706 = vpop.f32.mrb[0].mxu0
    %3707 = vdwg.mxu0
    %3708 = vmatprep.subr.bf16.mxu0 0
    %3709 = vmatpush1.bf16.msra.mxu0 %v3604
    %3710 = vmatprep.subr.bf16.mxu0 0
    %3711 = vmatpush1.bf16.msra.mxu0 %v3605
    %3712 = vmatprep.subr.bf16.mxu0 0
    %3713 = vmatpush1.bf16.msra.mxu0 %v3606
    %3714 = vmatprep.subr.bf16.mxu0 0
    %3715 = vmatpush1.bf16.msra.mxu0 %v3607
    %3716 = vmatprep.subr.bf16.mxu0 0
    %3717 = vmatpush1.bf16.msra.mxu0 %v3608
    %3718 = vmatprep.subr.bf16.mxu0 0
    %3719 = vmatpush1.bf16.msra.mxu0 %v3609
    %3720 = vmatprep.subr.bf16.mxu0 0
    %3721 = vmatpush1.bf16.msra.mxu0 %v3610
    %3722 = vmatprep.subr.bf16.mxu0 0
    %3723 = vmatpush1.bf16.msra.mxu0 %v3611
    %3724 = vmatprep.subr.bf16.mxu0 0
    %3725 = vmatpush1.bf16.msra.mxu0 %v3612
    %3726 = vmatprep.subr.bf16.mxu0 0
    %3727 = vmatpush1.bf16.msra.mxu0 %v3613
    %3728 = vmatprep.subr.bf16.mxu0 0
    %3729 = vmatpush1.bf16.msra.mxu0 %v3614
    %3730 = vmatprep.subr.bf16.mxu0 0
    %3731 = vmatpush1.bf16.msra.mxu0 %v3615
    %3732 = vmatprep.subr.bf16.mxu0 0
    %3733 = vmatpush1.bf16.msra.mxu0 %v3616
    %3734 = vmatprep.subr.bf16.mxu0 0
    %3735 = vmatpush1.bf16.msra.mxu0 %v3617
    %3736 = vmatprep.subr.bf16.mxu0 0
    %3737 = vmatpush1.bf16.msra.mxu0 %v3618
    %3738 = vmatprep.subr.bf16.mxu0 0
    %3739 = vmatpush1.bf16.msra.mxu0 %v3619
    %3740 = vmatprep.mubr.bf16.mxu0 %v3339
    %3741 = vmatmul.mubr.bf16.gmra.mrb[0].mxu0 %v3338
    %v3742 = vpop.f32.mrb[0].mxu0
    %v3743 = vadd.f32 %v3703, %v3742
    %v3744 = vpop.f32.mrb[0].mxu0
    %v3745 = vpop.f32.mrb[0].mxu0
    %v3746 = vpop.f32.mrb[0].mxu0
    %3747 = vdwg.mxu0
    %3748 = vmatprep.subr.bf16.mxu0 0
    %3749 = vmatpush1.bf16.msra.mxu0 %v3620
    %3750 = vmatprep.subr.bf16.mxu0 0
    %3751 = vmatpush1.bf16.msra.mxu0 %v3621
    %3752 = vmatprep.subr.bf16.mxu0 0
    %3753 = vmatpush1.bf16.msra.mxu0 %v3622
    %3754 = vmatprep.subr.bf16.mxu0 0
    %3755 = vmatpush1.bf16.msra.mxu0 %v3623
    %3756 = vmatprep.subr.bf16.mxu0 0
    %3757 = vmatpush1.bf16.msra.mxu0 %v3624
    %3758 = vmatprep.subr.bf16.mxu0 0
    %3759 = vmatpush1.bf16.msra.mxu0 %v3625
    %3760 = vmatprep.subr.bf16.mxu0 0
    %3761 = vmatpush1.bf16.msra.mxu0 %v3626
    %3762 = vmatprep.subr.bf16.mxu0 0
    %3763 = vmatpush1.bf16.msra.mxu0 %v3627
    %3764 = vmatprep.subr.bf16.mxu0 0
    %3765 = vmatpush1.bf16.msra.mxu0 0
    %3766 = vmatprep.subr.bf16.mxu0 0
    %3767 = vmatpush1.bf16.msra.mxu0 0
    %3768 = vmatprep.subr.bf16.mxu0 0
    %3769 = vmatpush1.bf16.msra.mxu0 0
    %3770 = vmatprep.subr.bf16.mxu0 0
    %3771 = vmatpush1.bf16.msra.mxu0 0
    %3772 = vmatprep.subr.bf16.mxu0 0
    %3773 = vmatpush1.bf16.msra.mxu0 0
    %3774 = vmatprep.subr.bf16.mxu0 0
    %3775 = vmatpush1.bf16.msra.mxu0 0
    %3776 = vmatprep.subr.bf16.mxu0 0
    %3777 = vmatpush1.bf16.msra.mxu0 0
    %3778 = vmatprep.subr.bf16.mxu0 0
    %3779 = vmatpush1.bf16.msra.mxu0 0
    %3780 = vmatprep.mubr.bf16.mxu0 0
    %3781 = vmatmul.mubr.bf16.gmra.mrb[0].mxu0 %v3340
    %v3782 = vpop.f32.mrb[0].mxu0
    %v3783 = vadd.f32 %v3743, %v3782
    %v3784 = vpop.f32.mrb[0].mxu0
    %v3785 = vpop.f32.mrb[0].mxu0
    %v3786 = vpop.f32.mrb[0].mxu0
    %3787 = vdwg.mxu0
    %3788 = vst [vmem:[#allocation11] sm:$0xff] %v3783
    // Predicated region
    $region42: #{tpu_custom_call.1} parent=1 // pred_check
      _
    $region43: #{tpu_custom_call.1} parent=1 // pred_check_branch
      %3790 = sbr.rel (0) target = $region45
    $region44: #{tpu_custom_call.1} parent=1 // pred_region
      %s3792 = ssub.s32 128, 128
      %3793 = vsyncadd [#allocation4], %s3792
      %s3795 = sshll.u32 [#allocation11], 4
      %s3796 = int_to_ptr.vmem [resolvable:$true] %s3795
      %3798 = dma.vmem_to_hbm [thread:$0]  %s3796, 128, %s5, [#allocation4]
    $region45: #{tpu_custom_call.1} parent=1 // pred_fallthru
      _
    // Predicated region
    $region46: #{tpu_custom_call.1} parent=1 // pred_check
      _
    $region47: #{tpu_custom_call.1} parent=1 // pred_check_branch
      %3800 = sbr.rel (0) target = $region49
    $region48: #{tpu_custom_call.1} parent=1 // pred_region
      %3801 = dma.done [#allocation4], 128
    $region49: #{tpu_custom_call.1} parent=1 // pred_fallthru
      _
    %3802 = vsyncpa [#allocation3], 1
    %3803 = vsyncpa [#allocation6], 1
    %3804 = vsyncpa [#allocation9], 1
    %3805 = vsyncpa [#allocation4], 1

</llo_original>
